<compile_context>
chip_gen: v6e
topology: v6e:2x2x1
jax: 0.10.0
libtpu: 0.0.40
codegen_flags: <defaults>
</compile_context>

<pallas_src>
import math
import functools

import jax
import jax.numpy as jnp
import numpy as np
from jax import lax
from jax.experimental import pallas as pl
from jax.experimental.pallas import tpu as pltpu


# -------------------------- in-kernel helpers --------------------------

def _layernorm(x, g, b, eps=1e-5):
    # PyTorch LayerNorm: population variance, eps inside rsqrt.  fp32 math.
    mu = jnp.mean(x, axis=-1, keepdims=True)
    var = jnp.mean((x - mu) ** 2, axis=-1, keepdims=True)
    return (x - mu) * lax.rsqrt(var + eps) * g + b


def _gelu_exact(x):
    # torch.nn.GELU() default = exact erf formulation.  fp32 math.
    return 0.5 * x * (1.0 + lax.erf(x * (1.0 / math.sqrt(2.0))))


# ------------------------------ kernel --------------------------------

def block_kernel(x_ref,
                 ln1_g_ref, ln1_b_ref,
                 wqkv_ref, bqkv_ref,
                 wp_ref, bp_ref,
                 ln2_g_ref, ln2_b_ref,
                 w1_ref, b1_ref, w2_ref, b2_ref,
                 o_ref, *, n_head):
    x = x_ref[0].astype(jnp.float32)                # (T, C) for this batch element
    T, C = x.shape
    hd = C // n_head
    scale = 1.0 / math.sqrt(hd)
    mm = jnp.bfloat16                               # MXU operand dtype

    # ---------------- attention branch: x + attn(ln1(x)) ----------------
    h = _layernorm(x, ln1_g_ref[0], ln1_b_ref[0])                      # fp32 (T, C)

    # fused QKV projection: one (T,C) x (C,3C) matmul, fp32 accumulate
    qkv = jnp.dot(h.astype(mm), wqkv_ref[...],
                  preferred_element_type=jnp.float32) + bqkv_ref[0]    # (T, 3C)
    q = qkv[:, 0 * C:1 * C].reshape(T, n_head, hd)
    k = qkv[:, 1 * C:2 * C].reshape(T, n_head, hd)
    v = qkv[:, 2 * C:3 * C].reshape(T, n_head, hd)

    # causal mask, built once (True where attention allowed)
    row = lax.broadcasted_iota(jnp.int32, (T, T), 0)
    col = lax.broadcasted_iota(jnp.int32, (T, T), 1)
    causal = col <= row

    # batched-head scores: (n_head, T, T), contraction over hd (no explicit .T)
    att = jnp.einsum('qhd,khd->hqk', q.astype(mm), k.astype(mm),
                     preferred_element_type=jnp.float32) * scale
    # reference quirk: masked entries filled with 0 (not -inf) before softmax
    att = jnp.where(causal[None, :, :], att, 0.0)
    att = att - jnp.max(att, axis=-1, keepdims=True)
    e = jnp.exp(att)
    p = e * pl.reciprocal(jnp.sum(e, axis=-1, keepdims=True), approx=True)

    # batched-head attention output -> (T, n_head, hd) -> (T, C)
    y = jnp.einsum('hqk,khd->qhd', p.astype(mm), v.astype(mm),
                   preferred_element_type=jnp.float32).reshape(T, C)
    y = jnp.dot(y.astype(mm), wp_ref[...],
                preferred_element_type=jnp.float32) + bp_ref[0]
    x = x + y

    # ------------------- MLP branch: x + mlp(ln2(x)) --------------------
    h2 = _layernorm(x, ln2_g_ref[0], ln2_b_ref[0])
    m = jnp.dot(h2.astype(mm), w1_ref[...],
                preferred_element_type=jnp.float32) + b1_ref[0]
    m = _gelu_exact(m)
    m = jnp.dot(m.astype(mm), w2_ref[...],
                preferred_element_type=jnp.float32) + b2_ref[0]

    o_ref[0] = (x + m).astype(o_ref.dtype)


# ------------------------------ wrapper --------------------------------

def transformer_block(x, params, n_head):
    B, T, C = x.shape
    mm = jnp.bfloat16

    # Fuse Q/K/V weights once (C, 3C) and pre-cast matmul weights to bf16.
    wqkv = jnp.concatenate([params["wq"], params["wk"], params["wv"]],
                           axis=1).astype(mm)                       # (C, 3C)
    bqkv = jnp.concatenate([params["bq"], params["bk"], params["bv"]],
                           axis=1).astype(jnp.float32)              # (1, 3C)

    kernel_params = [
        params["ln1_g"], params["ln1_b"],
        wqkv, bqkv,
        params["wp"].astype(mm), params["bp"],
        params["ln2_g"], params["ln2_b"],
        params["w1"].astype(mm), params["b1"],
        params["w2"].astype(mm), params["b2"],
    ]

    def full_spec(arr):
        nd = arr.ndim
        return pl.BlockSpec(arr.shape, lambda b, _nd=nd: (0,) * _nd)

    in_specs = [pl.BlockSpec((1, T, C), lambda b: (b, 0, 0))]
    in_specs += [full_spec(p) for p in kernel_params]

    return pl.pallas_call(
        functools.partial(block_kernel, n_head=n_head),
        out_shape=jax.ShapeDtypeStruct((B, T, C), x.dtype),
        grid_spec=pltpu.PrefetchScalarGridSpec(
            num_scalar_prefetch=0,
            grid=(B,),
            in_specs=in_specs,
            out_specs=pl.BlockSpec((1, T, C), lambda b: (b, 0, 0)),
        ),
        compiler_params=pltpu.CompilerParams(
            dimension_semantics=("parallel",)),
    )(x, *kernel_params)


# --------------------------- pure-JAX reference ---------------------------

def reference_block(x, params, n_head):
    B, T, C = x.shape
    hd = C // n_head

    def ln(v, g, b):
        mu = jnp.mean(v, axis=-1, keepdims=True)
        var = jnp.mean((v - mu) ** 2, axis=-1, keepdims=True)
        return (v - mu) / jnp.sqrt(var + 1e-5) * g[0] + b[0]

    h = ln(x, params["ln1_g"], params["ln1_b"])
    q = h @ params["wq"] + params["bq"][0]
    k = h @ params["wk"] + params["bk"][0]
    v = h @ params["wv"] + params["bv"][0]
    q = q.reshape(B, T, n_head, hd).transpose(0, 2, 1, 3)
    k = k.reshape(B, T, n_head, hd).transpose(0, 2, 1, 3)
    v = v.reshape(B, T, n_head, hd).transpose(0, 2, 1, 3)
    att = (q @ k.transpose(0, 1, 3, 2)) / math.sqrt(hd)
    mask = jnp.tril(jnp.ones((T, T)))[None, None]
    att = jnp.where(mask == 0, 0.0, att)
    att = jax.nn.softmax(att, axis=-1)
    y = (att @ v).transpose(0, 2, 1, 3).reshape(B, T, C)
    y = y @ params["wp"] + params["bp"][0]
    x = x + y

    h2 = ln(x, params["ln2_g"], params["ln2_b"])
    m = h2 @ params["w1"] + params["b1"][0]
    m = 0.5 * m * (1.0 + lax.erf(m / math.sqrt(2.0)))
    m = m @ params["w2"] + params["b2"][0]
    return x + m


# ------------------------------- main ----------------------------------

if __name__ == "__main__":
    B, T, C, n_head = 2, 8, 32, 4          # block_size = T = 8
    hidden = 4 * C

    key = jax.random.PRNGKey(0)
    keys = jax.random.split(key, 12)

    def w(k, shape, scale=0.02):
        return (scale * jax.random.normal(k, shape)).astype(jnp.float32)

    params = {
        "ln1_g": jnp.ones((1, C), jnp.float32),
        "ln1_b": jnp.zeros((1, C), jnp.float32),
        "wq": w(keys[0], (C, C)), "bq": w(keys[1], (1, C)),
        "wk": w(keys[2], (C, C)), "bk": w(keys[3], (1, C)),
        "wv": w(keys[4], (C, C)), "bv": w(keys[5], (1, C)),
        "wp": w(keys[6], (C, C)), "bp": w(keys[7], (1, C)),
        "ln2_g": jnp.ones((1, C), jnp.float32),
        "ln2_b": jnp.zeros((1, C), jnp.float32),
        "w1": w(keys[8], (C, hidden)), "b1": w(keys[9], (1, hidden)),
        "w2": w(keys[10], (hidden, C)), "b2": w(keys[11], (1, C)),
    }

    x = jax.random.normal(jax.random.PRNGKey(42), (B, T, C), jnp.float32)

    out = transformer_block(x, params, n_head)
    out = jax.block_until_ready(out)

    ref = reference_block(x, params, n_head)
    assert out.shape == (B, T, C)
    assert bool(jnp.all(jnp.isfinite(out)))
    np.testing.assert_allclose(np.asarray(out), np.asarray(ref),
                               rtol=1e-2, atol=1e-2)

    print("KERNEL_OK")
</pallas_src>

<mosaic_0001>
module attributes {stable_mosaic.version = 11 : i64} {
  func.func @block_kernel(%arg0: i32, %arg1: memref<1x8x32xf32, #tpu.memory_space<vmem>>, %arg2: memref<1x32xf32, #tpu.memory_space<vmem>>, %arg3: memref<1x32xf32, #tpu.memory_space<vmem>>, %arg4: memref<32x96xbf16, #tpu.memory_space<vmem>>, %arg5: memref<1x96xf32, #tpu.memory_space<vmem>>, %arg6: memref<32x32xbf16, #tpu.memory_space<vmem>>, %arg7: memref<1x32xf32, #tpu.memory_space<vmem>>, %arg8: memref<1x32xf32, #tpu.memory_space<vmem>>, %arg9: memref<1x32xf32, #tpu.memory_space<vmem>>, %arg10: memref<32x128xbf16, #tpu.memory_space<vmem>>, %arg11: memref<1x128xf32, #tpu.memory_space<vmem>>, %arg12: memref<128x32xbf16, #tpu.memory_space<vmem>>, %arg13: memref<1x32xf32, #tpu.memory_space<vmem>>, %arg14: memref<1x8x32xf32, #tpu.memory_space<vmem>>) attributes {dimension_semantics = [#tpu.dimension_semantics<parallel>], iteration_bounds = array<i64: 2>, scalar_prefetch = 0 : i64, scratch_operands = 0 : i64, tpu.core_type = #tpu.core_type<tc>, window_params = [{transform_indices = @transform_0, window_bounds = array<i64: 1, 8, 32>}, {pipeline_mode = #tpu.pipeline_mode<synchronous>, transform_indices = @transform_1, window_bounds = array<i64: 1, 32>}, {pipeline_mode = #tpu.pipeline_mode<synchronous>, transform_indices = @transform_2, window_bounds = array<i64: 1, 32>}, {pipeline_mode = #tpu.pipeline_mode<synchronous>, transform_indices = @transform_3, window_bounds = array<i64: 32, 96>}, {pipeline_mode = #tpu.pipeline_mode<synchronous>, transform_indices = @transform_4, window_bounds = array<i64: 1, 96>}, {pipeline_mode = #tpu.pipeline_mode<synchronous>, transform_indices = @transform_5, window_bounds = array<i64: 32, 32>}, {pipeline_mode = #tpu.pipeline_mode<synchronous>, transform_indices = @transform_6, window_bounds = array<i64: 1, 32>}, {pipeline_mode = #tpu.pipeline_mode<synchronous>, transform_indices = @transform_7, window_bounds = array<i64: 1, 32>}, {pipeline_mode = #tpu.pipeline_mode<synchronous>, transform_indices = @transform_8, window_bounds = array<i64: 1, 32>}, {pipeline_mode = #tpu.pipeline_mode<synchronous>, transform_indices = @transform_9, window_bounds = array<i64: 32, 128>}, {pipeline_mode = #tpu.pipeline_mode<synchronous>, transform_indices = @transform_10, window_bounds = array<i64: 1, 128>}, {pipeline_mode = #tpu.pipeline_mode<synchronous>, transform_indices = @transform_11, window_bounds = array<i64: 128, 32>}, {pipeline_mode = #tpu.pipeline_mode<synchronous>, transform_indices = @transform_12, window_bounds = array<i64: 1, 32>}, {transform_indices = @transform_13, window_bounds = array<i64: 1, 8, 32>}]} {
    %c0 = arith.constant 0 : index
    %c0_0 = arith.constant 0 : index
    %c0_1 = arith.constant 0 : index
    %0 = vector.load %arg1[%c0, %c0_0, %c0_1] : memref<1x8x32xf32, #tpu.memory_space<vmem>>, vector<1x8x32xf32>
    %1 = vector.shape_cast %0 : vector<1x8x32xf32> to vector<8x32xf32>
    %c0_2 = arith.constant 0 : index
    %c0_3 = arith.constant 0 : index
    %2 = vector.load %arg2[%c0_2, %c0_3] : memref<1x32xf32, #tpu.memory_space<vmem>>, vector<1x32xf32>
    %3 = vector.shape_cast %2 : vector<1x32xf32> to vector<32xf32>
    %c0_4 = arith.constant 0 : index
    %c0_5 = arith.constant 0 : index
    %4 = vector.load %arg3[%c0_4, %c0_5] : memref<1x32xf32, #tpu.memory_space<vmem>>, vector<1x32xf32>
    %5 = vector.shape_cast %4 : vector<1x32xf32> to vector<32xf32>
    %cst = arith.constant dense<0.000000e+00> : vector<8xf32>
    %6 = vector.multi_reduction <add>, %1, %cst [1] : vector<8x32xf32> to vector<8xf32>
    %7 = vector.shape_cast %6 : vector<8xf32> to vector<8x1xf32>
    %cst_6 = arith.constant 3.200000e+01 : f32
    %8 = vector.broadcast %cst_6 : f32 to vector<8x1xf32>
    %9 = arith.divf %7, %8 : vector<8x1xf32>
    %10 = vector.broadcast %9 : vector<8x1xf32> to vector<8x32xf32>
    %11 = arith.subf %1, %10 : vector<8x32xf32>
    %12 = arith.mulf %11, %11 : vector<8x32xf32>
    %cst_7 = arith.constant dense<0.000000e+00> : vector<8xf32>
    %13 = vector.multi_reduction <add>, %12, %cst_7 [1] : vector<8x32xf32> to vector<8xf32>
    %14 = vector.shape_cast %13 : vector<8xf32> to vector<8x1xf32>
    %cst_8 = arith.constant 3.200000e+01 : f32
    %15 = vector.broadcast %cst_8 : f32 to vector<8x1xf32>
    %16 = arith.divf %14, %15 : vector<8x1xf32>
    %17 = vector.broadcast %9 : vector<8x1xf32> to vector<8x32xf32>
    %18 = arith.subf %1, %17 : vector<8x32xf32>
    %cst_9 = arith.constant 9.99999974E-6 : f32
    %19 = vector.broadcast %cst_9 : f32 to vector<8x1xf32>
    %20 = arith.addf %16, %19 : vector<8x1xf32>
    %21 = math.rsqrt %20 : vector<8x1xf32>
    %22 = vector.broadcast %21 : vector<8x1xf32> to vector<8x32xf32>
    %23 = arith.mulf %18, %22 : vector<8x32xf32>
    %24 = vector.shape_cast %3 : vector<32xf32> to vector<1x32xf32>
    %25 = vector.broadcast %24 : vector<1x32xf32> to vector<8x32xf32>
    %26 = arith.mulf %23, %25 : vector<8x32xf32>
    %27 = vector.shape_cast %5 : vector<32xf32> to vector<1x32xf32>
    %28 = vector.broadcast %27 : vector<1x32xf32> to vector<8x32xf32>
    %29 = arith.addf %26, %28 : vector<8x32xf32>
    %30 = arith.truncf %29 : vector<8x32xf32> to vector<8x32xbf16>
    %c0_10 = arith.constant 0 : index
    %c0_11 = arith.constant 0 : index
    %31 = vector.load %arg4[%c0_10, %c0_11] : memref<32x96xbf16, #tpu.memory_space<vmem>>, vector<32x96xbf16>
    %cst_12 = arith.constant dense<0.000000e+00> : vector<8x96xf32>
    %32 = tpu.matmul %30, %31, %cst_12 {dimension_numbers = #tpu.dot_dimension_numbers<[1], [0], [0], [1], [0, 0, 1, 1], [], []>} : vector<8x32xbf16>, vector<32x96xbf16>, vector<8x96xf32> -> vector<8x96xf32>
    %c0_13 = arith.constant 0 : index
    %c0_14 = arith.constant 0 : index
    %33 = vector.load %arg5[%c0_13, %c0_14] : memref<1x96xf32, #tpu.memory_space<vmem>>, vector<1x96xf32>
    %34 = vector.shape_cast %33 : vector<1x96xf32> to vector<96xf32>
    %35 = vector.shape_cast %34 : vector<96xf32> to vector<1x96xf32>
    %36 = vector.broadcast %35 : vector<1x96xf32> to vector<8x96xf32>
    %37 = arith.addf %32, %36 : vector<8x96xf32>
    %38 = vector.extract_strided_slice %37 {offsets = [0, 0], sizes = [8, 32], strides = [1, 1]} : vector<8x96xf32> to vector<8x32xf32>
    %39 = vector.shape_cast %38 : vector<8x32xf32> to vector<8x4x8xf32>
    %40 = vector.extract_strided_slice %37 {offsets = [0, 32], sizes = [8, 32], strides = [1, 1]} : vector<8x96xf32> to vector<8x32xf32>
    %41 = vector.shape_cast %40 : vector<8x32xf32> to vector<8x4x8xf32>
    %42 = vector.extract_strided_slice %37 {offsets = [0, 64], sizes = [8, 32], strides = [1, 1]} : vector<8x96xf32> to vector<8x32xf32>
    %43 = vector.shape_cast %42 : vector<8x32xf32> to vector<8x4x8xf32>
    %44 = tpu.iota {dimensions = array<i32: 0>} : vector<8x8xi32>
    %45 = tpu.iota {dimensions = array<i32: 1>} : vector<8x8xi32>
    %46 = arith.cmpi sle, %45, %44 : vector<8x8xi32>
    %47 = arith.truncf %39 : vector<8x4x8xf32> to vector<8x4x8xbf16>
    %48 = arith.truncf %41 : vector<8x4x8xf32> to vector<8x4x8xbf16>
    "tpu.trace_start"() <{level = 10 : i32, message = "qhd,khd->hqk"}> : () -> ()
    %cst_15 = arith.constant dense<0.000000e+00> : vector<4x8x8xf32>
    %49 = tpu.matmul %47, %48, %cst_15 {dimension_numbers = #tpu.dot_dimension_numbers<[2], [2], [0], [0], [0, 1, 0, 0, 1, 0], [1], [1]>} : vector<8x4x8xbf16>, vector<8x4x8xbf16>, vector<4x8x8xf32> -> vector<4x8x8xf32>
    "tpu.trace_stop"() : () -> ()
    %cst_16 = arith.constant 0.353553385 : f32
    %50 = vector.broadcast %cst_16 : f32 to vector<4x8x8xf32>
    %51 = arith.mulf %49, %50 : vector<4x8x8xf32>
    %52 = vector.shape_cast %46 : vector<8x8xi1> to vector<1x8x8xi1>
    %cst_17 = arith.constant 0.000000e+00 : f32
    %53 = vector.shape_cast %52 : vector<1x8x8xi1> to vector<1x8x8xi1>
    %54 = vector.broadcast %53 : vector<1x8x8xi1> to vector<4x8x8xi1>
    %55 = vector.broadcast %cst_17 : f32 to vector<4x8x8xf32>
    %56 = arith.select %54, %51, %55 : vector<4x8x8xi1>, vector<4x8x8xf32>
    %cst_18 = arith.constant dense<0xFF800000> : vector<4x8xf32>
    %57 = vector.multi_reduction <maximumf>, %56, %cst_18 [2] : vector<4x8x8xf32> to vector<4x8xf32>
    %58 = vector.shape_cast %57 : vector<4x8xf32> to vector<4x8x1xf32>
    %59 = vector.broadcast %58 : vector<4x8x1xf32> to vector<4x8x8xf32>
    %60 = arith.subf %56, %59 : vector<4x8x8xf32>
    %61 = math.exp %60 : vector<4x8x8xf32>
    %cst_19 = arith.constant dense<0.000000e+00> : vector<4x8xf32>
    %62 = vector.multi_reduction <add>, %61, %cst_19 [2] : vector<4x8x8xf32> to vector<4x8xf32>
    %63 = vector.shape_cast %62 : vector<4x8xf32> to vector<4x8x1xf32>
    %64 = tpu.reciprocal %63 {approx = true} : vector<4x8x1xf32> -> vector<4x8x1xf32>
    %65 = vector.broadcast %64 : vector<4x8x1xf32> to vector<4x8x8xf32>
    %66 = arith.mulf %61, %65 : vector<4x8x8xf32>
    %67 = arith.truncf %66 : vector<4x8x8xf32> to vector<4x8x8xbf16>
    %68 = arith.truncf %43 : vector<8x4x8xf32> to vector<8x4x8xbf16>
    "tpu.trace_start"() <{level = 10 : i32, message = "hqk,khd->qhd"}> : () -> ()
    %cst_20 = arith.constant dense<0.000000e+00> : vector<4x8x8xf32>
    %69 = tpu.matmul %68, %67, %cst_20 {dimension_numbers = #tpu.dot_dimension_numbers<[0], [2], [2], [1], [0, 1, 0, 2, 1, 1], [1], [0]>} : vector<8x4x8xbf16>, vector<4x8x8xbf16>, vector<4x8x8xf32> -> vector<4x8x8xf32>
    %70 = tpu.transpose %69, [2, 0, 1] : vector<4x8x8xf32> -> vector<8x4x8xf32>
    "tpu.trace_stop"() : () -> ()
    %71 = vector.shape_cast %70 : vector<8x4x8xf32> to vector<8x32xf32>
    %72 = arith.truncf %71 : vector<8x32xf32> to vector<8x32xbf16>
    %c0_21 = arith.constant 0 : index
    %c0_22 = arith.constant 0 : index
    %73 = vector.load %arg6[%c0_21, %c0_22] : memref<32x32xbf16, #tpu.memory_space<vmem>>, vector<32x32xbf16>
    %cst_23 = arith.constant dense<0.000000e+00> : vector<8x32xf32>
    %74 = tpu.matmul %72, %73, %cst_23 {dimension_numbers = #tpu.dot_dimension_numbers<[1], [0], [0], [1], [0, 0, 1, 1], [], []>} : vector<8x32xbf16>, vector<32x32xbf16>, vector<8x32xf32> -> vector<8x32xf32>
    %c0_24 = arith.constant 0 : index
    %c0_25 = arith.constant 0 : index
    %75 = vector.load %arg7[%c0_24, %c0_25] : memref<1x32xf32, #tpu.memory_space<vmem>>, vector<1x32xf32>
    %76 = vector.shape_cast %75 : vector<1x32xf32> to vector<32xf32>
    %77 = vector.shape_cast %76 : vector<32xf32> to vector<1x32xf32>
    %78 = vector.broadcast %77 : vector<1x32xf32> to vector<8x32xf32>
    %79 = arith.addf %74, %78 : vector<8x32xf32>
    %80 = arith.addf %1, %79 : vector<8x32xf32>
    %c0_26 = arith.constant 0 : index
    %c0_27 = arith.constant 0 : index
    %81 = vector.load %arg8[%c0_26, %c0_27] : memref<1x32xf32, #tpu.memory_space<vmem>>, vector<1x32xf32>
    %82 = vector.shape_cast %81 : vector<1x32xf32> to vector<32xf32>
    %c0_28 = arith.constant 0 : index
    %c0_29 = arith.constant 0 : index
    %83 = vector.load %arg9[%c0_28, %c0_29] : memref<1x32xf32, #tpu.memory_space<vmem>>, vector<1x32xf32>
    %84 = vector.shape_cast %83 : vector<1x32xf32> to vector<32xf32>
    %cst_30 = arith.constant dense<0.000000e+00> : vector<8xf32>
    %85 = vector.multi_reduction <add>, %80, %cst_30 [1] : vector<8x32xf32> to vector<8xf32>
    %86 = vector.shape_cast %85 : vector<8xf32> to vector<8x1xf32>
    %cst_31 = arith.constant 3.200000e+01 : f32
    %87 = vector.broadcast %cst_31 : f32 to vector<8x1xf32>
    %88 = arith.divf %86, %87 : vector<8x1xf32>
    %89 = vector.broadcast %88 : vector<8x1xf32> to vector<8x32xf32>
    %90 = arith.subf %80, %89 : vector<8x32xf32>
    %91 = arith.mulf %90, %90 : vector<8x32xf32>
    %cst_32 = arith.constant dense<0.000000e+00> : vector<8xf32>
    %92 = vector.multi_reduction <add>, %91, %cst_32 [1] : vector<8x32xf32> to vector<8xf32>
    %93 = vector.shape_cast %92 : vector<8xf32> to vector<8x1xf32>
    %cst_33 = arith.constant 3.200000e+01 : f32
    %94 = vector.broadcast %cst_33 : f32 to vector<8x1xf32>
    %95 = arith.divf %93, %94 : vector<8x1xf32>
    %96 = vector.broadcast %88 : vector<8x1xf32> to vector<8x32xf32>
    %97 = arith.subf %80, %96 : vector<8x32xf32>
    %cst_34 = arith.constant 9.99999974E-6 : f32
    %98 = vector.broadcast %cst_34 : f32 to vector<8x1xf32>
    %99 = arith.addf %95, %98 : vector<8x1xf32>
    %100 = math.rsqrt %99 : vector<8x1xf32>
    %101 = vector.broadcast %100 : vector<8x1xf32> to vector<8x32xf32>
    %102 = arith.mulf %97, %101 : vector<8x32xf32>
    %103 = vector.shape_cast %82 : vector<32xf32> to vector<1x32xf32>
    %104 = vector.broadcast %103 : vector<1x32xf32> to vector<8x32xf32>
    %105 = arith.mulf %102, %104 : vector<8x32xf32>
    %106 = vector.shape_cast %84 : vector<32xf32> to vector<1x32xf32>
    %107 = vector.broadcast %106 : vector<1x32xf32> to vector<8x32xf32>
    %108 = arith.addf %105, %107 : vector<8x32xf32>
    %109 = arith.truncf %108 : vector<8x32xf32> to vector<8x32xbf16>
    %c0_35 = arith.constant 0 : index
    %c0_36 = arith.constant 0 : index
    %110 = vector.load %arg10[%c0_35, %c0_36] : memref<32x128xbf16, #tpu.memory_space<vmem>>, vector<32x128xbf16>
    %cst_37 = arith.constant dense<0.000000e+00> : vector<8x128xf32>
    %111 = tpu.matmul %109, %110, %cst_37 {dimension_numbers = #tpu.dot_dimension_numbers<[1], [0], [0], [1], [0, 0, 1, 1], [], []>} : vector<8x32xbf16>, vector<32x128xbf16>, vector<8x128xf32> -> vector<8x128xf32>
    %c0_38 = arith.constant 0 : index
    %c0_39 = arith.constant 0 : index
    %112 = vector.load %arg11[%c0_38, %c0_39] : memref<1x128xf32, #tpu.memory_space<vmem>>, vector<1x128xf32>
    %113 = vector.shape_cast %112 : vector<1x128xf32> to vector<128xf32>
    %114 = vector.shape_cast %113 : vector<128xf32> to vector<1x128xf32>
    %115 = vector.broadcast %114 : vector<1x128xf32> to vector<8x128xf32>
    %116 = arith.addf %111, %115 : vector<8x128xf32>
    %cst_40 = arith.constant 5.000000e-01 : f32
    %117 = vector.broadcast %cst_40 : f32 to vector<8x128xf32>
    %118 = arith.mulf %117, %116 : vector<8x128xf32>
    %cst_41 = arith.constant 0.707106769 : f32
    %119 = vector.broadcast %cst_41 : f32 to vector<8x128xf32>
    %120 = arith.mulf %116, %119 : vector<8x128xf32>
    %121 = math.erf %120 : vector<8x128xf32>
    %cst_42 = arith.constant 1.000000e+00 : f32
    %122 = vector.broadcast %cst_42 : f32 to vector<8x128xf32>
    %123 = arith.addf %122, %121 : vector<8x128xf32>
    %124 = arith.mulf %118, %123 : vector<8x128xf32>
    %125 = arith.truncf %124 : vector<8x128xf32> to vector<8x128xbf16>
    %c0_43 = arith.constant 0 : index
    %c0_44 = arith.constant 0 : index
    %126 = vector.load %arg12[%c0_43, %c0_44] : memref<128x32xbf16, #tpu.memory_space<vmem>>, vector<128x32xbf16>
    %cst_45 = arith.constant dense<0.000000e+00> : vector<8x32xf32>
    %127 = tpu.matmul %125, %126, %cst_45 {dimension_numbers = #tpu.dot_dimension_numbers<[1], [0], [0], [1], [0, 0, 1, 1], [], []>} : vector<8x128xbf16>, vector<128x32xbf16>, vector<8x32xf32> -> vector<8x32xf32>
    %c0_46 = arith.constant 0 : index
    %c0_47 = arith.constant 0 : index
    %128 = vector.load %arg13[%c0_46, %c0_47] : memref<1x32xf32, #tpu.memory_space<vmem>>, vector<1x32xf32>
    %129 = vector.shape_cast %128 : vector<1x32xf32> to vector<32xf32>
    %130 = vector.shape_cast %129 : vector<32xf32> to vector<1x32xf32>
    %131 = vector.broadcast %130 : vector<1x32xf32> to vector<8x32xf32>
    %132 = arith.addf %127, %131 : vector<8x32xf32>
    %133 = arith.addf %80, %132 : vector<8x32xf32>
    %c0_48 = arith.constant 0 : index
    %c0_49 = arith.constant 0 : index
    %c0_50 = arith.constant 0 : index
    %134 = vector.load %arg14[%c0_48, %c0_49, %c0_50] : memref<1x8x32xf32, #tpu.memory_space<vmem>>, vector<1x8x32xf32>
    %135 = vector.shape_cast %134 : vector<1x8x32xf32> to vector<8x32xf32>
    %136 = vector.shape_cast %133 : vector<8x32xf32> to vector<1x8x32xf32>
    tpu.vector_store %arg14[%c0_48, %c0_49, %c0_50], %136 {strides = array<i32>} : memref<1x8x32xf32, #tpu.memory_space<vmem>>, vector<1x8x32xf32>,
    return
  }
  func.func @transform_0(%arg0: i32) -> (i32, i32, i32) {
    %c0_i32 = arith.constant 0 : i32
    %c0_i32_0 = arith.constant 0 : i32
    %c0_i32_1 = arith.constant 0 : i32
    return %arg0, %c0_i32, %c0_i32_0 : i32, i32, i32
  }
  func.func @transform_1(%arg0: i32) -> (i32, i32) {
    %c0_i32 = arith.constant 0 : i32
    %c0_i32_0 = arith.constant 0 : i32
    %c0_i32_1 = arith.constant 0 : i32
    return %c0_i32, %c0_i32_0 : i32, i32
  }
  func.func @transform_2(%arg0: i32) -> (i32, i32) {
    %c0_i32 = arith.constant 0 : i32
    %c0_i32_0 = arith.constant 0 : i32
    %c0_i32_1 = arith.constant 0 : i32
    return %c0_i32, %c0_i32_0 : i32, i32
  }
  func.func @transform_3(%arg0: i32) -> (i32, i32) {
    %c0_i32 = arith.constant 0 : i32
    %c0_i32_0 = arith.constant 0 : i32
    %c0_i32_1 = arith.constant 0 : i32
    return %c0_i32, %c0_i32_0 : i32, i32
  }
  func.func @transform_4(%arg0: i32) -> (i32, i32) {
    %c0_i32 = arith.constant 0 : i32
    %c0_i32_0 = arith.constant 0 : i32
    %c0_i32_1 = arith.constant 0 : i32
    return %c0_i32, %c0_i32_0 : i32, i32
  }
  func.func @transform_5(%arg0: i32) -> (i32, i32) {
    %c0_i32 = arith.constant 0 : i32
    %c0_i32_0 = arith.constant 0 : i32
    %c0_i32_1 = arith.constant 0 : i32
    return %c0_i32, %c0_i32_0 : i32, i32
  }
  func.func @transform_6(%arg0: i32) -> (i32, i32) {
    %c0_i32 = arith.constant 0 : i32
    %c0_i32_0 = arith.constant 0 : i32
    %c0_i32_1 = arith.constant 0 : i32
    return %c0_i32, %c0_i32_0 : i32, i32
  }
  func.func @transform_7(%arg0: i32) -> (i32, i32) {
    %c0_i32 = arith.constant 0 : i32
    %c0_i32_0 = arith.constant 0 : i32
    %c0_i32_1 = arith.constant 0 : i32
    return %c0_i32, %c0_i32_0 : i32, i32
  }
  func.func @transform_8(%arg0: i32) -> (i32, i32) {
    %c0_i32 = arith.constant 0 : i32
    %c0_i32_0 = arith.constant 0 : i32
    %c0_i32_1 = arith.constant 0 : i32
    return %c0_i32, %c0_i32_0 : i32, i32
  }
  func.func @transform_9(%arg0: i32) -> (i32, i32) {
    %c0_i32 = arith.constant 0 : i32
    %c0_i32_0 = arith.constant 0 : i32
    %c0_i32_1 = arith.constant 0 : i32
    return %c0_i32, %c0_i32_0 : i32, i32
  }
  func.func @transform_10(%arg0: i32) -> (i32, i32) {
    %c0_i32 = arith.constant 0 : i32
    %c0_i32_0 = arith.constant 0 : i32
    %c0_i32_1 = arith.constant 0 : i32
    return %c0_i32, %c0_i32_0 : i32, i32
  }
  func.func @transform_11(%arg0: i32) -> (i32, i32) {
    %c0_i32 = arith.constant 0 : i32
    %c0_i32_0 = arith.constant 0 : i32
    %c0_i32_1 = arith.constant 0 : i32
    return %c0_i32, %c0_i32_0 : i32, i32
  }
  func.func @transform_12(%arg0: i32) -> (i32, i32) {
    %c0_i32 = arith.constant 0 : i32
    %c0_i32_0 = arith.constant 0 : i32
    %c0_i32_1 = arith.constant 0 : i32
    return %c0_i32, %c0_i32_0 : i32, i32
  }
  func.func @transform_13(%arg0: i32) -> (i32, i32, i32) {
    %c0_i32 = arith.constant 0 : i32
    %c0_i32_0 = arith.constant 0 : i32
    %c0_i32_1 = arith.constant 0 : i32
    return %arg0, %c0_i32, %c0_i32_0 : i32, i32, i32
  }
}

</mosaic_0001>

<llo_original>
// kernel: tpu_custom_call.1
$region0: #{tpu_custom_call.1}
  #allocation0 [shape = 'u32[]', space=smem, size = 0x4, offset = 0x4, fixed_abs, tag = 'smem constant byte address 0x4 - core index']
  #allocation1 [shape = 'u32[144,128]{1,0:T(1,128)}', space=vmem, size = 0x12000, scoped, tag = 'internal scratch']
  %s0 = inlined_call_operand.vmem [shape: f32[2,8,32], index: 0, kind: input, shape index: {}]
  %s1 = inlined_call_operand.vmem [shape: f32[1,32], index: 1, kind: input, shape index: {}]
  %s2 = inlined_call_operand.vmem [shape: f32[1,32], index: 2, kind: input, shape index: {}]
  %s3 = inlined_call_operand.vmem [shape: bf16[32,96], index: 3, kind: input, shape index: {}]
  %s4 = inlined_call_operand.vmem [shape: f32[1,96], index: 4, kind: input, shape index: {}]
  %s5 = inlined_call_operand.vmem [shape: bf16[32,32], index: 5, kind: input, shape index: {}]
  %s6 = inlined_call_operand.vmem [shape: f32[1,32], index: 6, kind: input, shape index: {}]
  %s7 = inlined_call_operand.vmem [shape: f32[1,32], index: 7, kind: input, shape index: {}]
  %s8 = inlined_call_operand.vmem [shape: f32[1,32], index: 8, kind: input, shape index: {}]
  %s9 = inlined_call_operand.vmem [shape: bf16[32,128], index: 9, kind: input, shape index: {}]
  %s10 = inlined_call_operand.vmem [shape: f32[1,128], index: 10, kind: input, shape index: {}]
  %s11 = inlined_call_operand.vmem [shape: bf16[128,32], index: 11, kind: input, shape index: {}]
  %s12 = inlined_call_operand.vmem [shape: f32[1,32], index: 12, kind: input, shape index: {}]
  %s13 = inlined_call_operand.hbm [shape: f32[2,8,32], index: 13, kind: output, shape index: {}]
  %s14 = sld [smem:[#allocation0]]
  $region85: #{tpu_custom_call.1} parent=0
    _
  %s16 = ssub.s32 1, %s14
  %s17 = scalar_select 0, %s16, %s14
  $region1: #{tpu_custom_call.1} parent=0
    #allocation2 [shape = 'u8[8192]{0}', space=vmem, size = 0x2000, scoped, tag = 'output window, operand 0']
    #allocation3 [shape = 's32[2]{0}', space=sflag, size = 0x8, scoped, tag = 'scoped memory for tpu_custom_call.1']
    %18 = vsyncpa [#allocation3], 0
    %s19 = scalar_lea.sflag [#allocation3], 1
    %20 = vsyncpa %s19, 0
    loop: start=0, step=1, limit=4
    $region2: #{tpu_custom_call.1} parent=1 // loop_pre_header
      _
    $region3: #{tpu_custom_call.1} parent=1 // loop_header
      %s22 = sphi 0, %s26
      %p23 = scmp.ge.s32.totalorder %s22, 4
      %s32 = sphi 0, %s34
      %s35 = sphi 0, %s32
      %s36 = sphi 0, %s35
      %s52 = sphi 0, %s36
      %s56 = sphi 0, %s56
      %s58 = sphi 0, %s56
      %s59 = sphi 0, %s58
      %s73 = sphi 0, %s59
      %s77 = sphi 0, %s77
      %s79 = sphi 0, %s77
      %s80 = sphi 0, %s79
      %s94 = sphi 0, %s80
      %s98 = sphi 0, %s98
      %s100 = sphi 0, %s98
      %s101 = sphi 0, %s100
      %s115 = sphi 0, %s101
      %s119 = sphi 0, %s119
      %s121 = sphi 0, %s119
      %s122 = sphi 0, %s121
      %s136 = sphi 0, %s122
      %s140 = sphi 0, %s140
      %s142 = sphi 0, %s140
      %s143 = sphi 0, %s142
      %s157 = sphi 0, %s143
      %s161 = sphi 0, %s161
      %s163 = sphi 0, %s161
      %s164 = sphi 0, %s163
      %s178 = sphi 0, %s164
      %s182 = sphi 0, %s182
      %s184 = sphi 0, %s182
      %s185 = sphi 0, %s184
      %s199 = sphi 0, %s185
      %s203 = sphi 0, %s203
      %s205 = sphi 0, %s203
      %s206 = sphi 0, %s205
      %s220 = sphi 0, %s206
      %s224 = sphi 0, %s224
      %s226 = sphi 0, %s224
      %s227 = sphi 0, %s226
      %s241 = sphi 0, %s227
      %s245 = sphi 0, %s245
      %s247 = sphi 0, %s245
      %s248 = sphi 0, %s247
      %s262 = sphi 0, %s248
      %s266 = sphi 0, %s266
      %s268 = sphi 0, %s266
      %s269 = sphi 0, %s268
      %s283 = sphi 0, %s269
      %s287 = sphi 0, %s287
      %s289 = sphi 0, %s287
      %s290 = sphi 0, %s289
      %s304 = sphi 0, %s290
      %s310 = sphi 0, %s312
      %s313 = sphi 0, %s310
      %s314 = sphi 0, %s313
      %s330 = sphi 0, %s314
    $region4: #{tpu_custom_call.1} parent=1 // loop_header_branch
      %25 = sbr.rel (%p23) target = $region8
    $region5: #{tpu_custom_call.1} parent=1 // loop_body
      %s27 = ssub.s32 %s22, 1
      %s28 = ssub.s32 %s22, 2
      %s29 = sadd.s32 %s22, 1
      %s30 = ssub.s32 %s22, %s29
      %p31 = scmp.eq.s32.totalorder %s30, 0
      %s33 = sadd.s32 %s32, 1
      %s34 = scalar_select %p31, %s32, %s33
      %p37 = pneg %p31
      %p38 = scmp.eq.s32.totalorder %s22, 1
      %p39 = por %p37, %p38
      %p40 = scmp.ne.s32.totalorder %s32, %s35
      %p41 = scmp.eq.s32.totalorder %s22, 0
      %p42 = por %p40, %p41
      %p43 = scmp.ne.s32.totalorder %s32, %s35
      %p44 = scmp.eq.s32.totalorder %s27, 1
      %p45 = por %p43, %p44
      %p46 = scmp.ne.s32.totalorder %s35, %s36
      %p47 = scmp.eq.s32.totalorder %s27, 0
      %p48 = por %p46, %p47
      %p49 = scmp.ne.s32.totalorder %s35, %s36
      %p50 = scmp.eq.s32.totalorder %s28, 1
      %p51 = por %p49, %p50
      %p53 = scmp.ne.s32.totalorder %s36, %s52
      %p54 = scmp.eq.s32.totalorder %s28, 0
      %p55 = por %p53, %p54
      %s57 = sadd.s32 %s56, 1
      %p60 = scmp.eq.s32.totalorder %s22, 1
      %p61 = scmp.ne.s32.totalorder %s56, %s58
      %p62 = scmp.eq.s32.totalorder %s22, 0
      %p63 = por %p61, %p62
      %p64 = scmp.ne.s32.totalorder %s56, %s58
      %p65 = scmp.eq.s32.totalorder %s27, 1
      %p66 = por %p64, %p65
      %p67 = scmp.ne.s32.totalorder %s58, %s59
      %p68 = scmp.eq.s32.totalorder %s27, 0
      %p69 = por %p67, %p68
      %p70 = scmp.ne.s32.totalorder %s58, %s59
      %p71 = scmp.eq.s32.totalorder %s28, 1
      %p72 = por %p70, %p71
      %p74 = scmp.ne.s32.totalorder %s59, %s73
      %p75 = scmp.eq.s32.totalorder %s28, 0
      %p76 = por %p74, %p75
      %s78 = sadd.s32 %s77, 1
      %p81 = scmp.eq.s32.totalorder %s22, 1
      %p82 = scmp.ne.s32.totalorder %s77, %s79
      %p83 = scmp.eq.s32.totalorder %s22, 0
      %p84 = por %p82, %p83
      %p85 = scmp.ne.s32.totalorder %s77, %s79
      %p86 = scmp.eq.s32.totalorder %s27, 1
      %p87 = por %p85, %p86
      %p88 = scmp.ne.s32.totalorder %s79, %s80
      %p89 = scmp.eq.s32.totalorder %s27, 0
      %p90 = por %p88, %p89
      %p91 = scmp.ne.s32.totalorder %s79, %s80
      %p92 = scmp.eq.s32.totalorder %s28, 1
      %p93 = por %p91, %p92
      %p95 = scmp.ne.s32.totalorder %s80, %s94
      %p96 = scmp.eq.s32.totalorder %s28, 0
      %p97 = por %p95, %p96
      %s99 = sadd.s32 %s98, 1
      %p102 = scmp.eq.s32.totalorder %s22, 1
      %p103 = scmp.ne.s32.totalorder %s98, %s100
      %p104 = scmp.eq.s32.totalorder %s22, 0
      %p105 = por %p103, %p104
      %p106 = scmp.ne.s32.totalorder %s98, %s100
      %p107 = scmp.eq.s32.totalorder %s27, 1
      %p108 = por %p106, %p107
      %p109 = scmp.ne.s32.totalorder %s100, %s101
      %p110 = scmp.eq.s32.totalorder %s27, 0
      %p111 = por %p109, %p110
      %p112 = scmp.ne.s32.totalorder %s100, %s101
      %p113 = scmp.eq.s32.totalorder %s28, 1
      %p114 = por %p112, %p113
      %p116 = scmp.ne.s32.totalorder %s101, %s115
      %p117 = scmp.eq.s32.totalorder %s28, 0
      %p118 = por %p116, %p117
      %s120 = sadd.s32 %s119, 1
      %p123 = scmp.eq.s32.totalorder %s22, 1
      %p124 = scmp.ne.s32.totalorder %s119, %s121
      %p125 = scmp.eq.s32.totalorder %s22, 0
      %p126 = por %p124, %p125
      %p127 = scmp.ne.s32.totalorder %s119, %s121
      %p128 = scmp.eq.s32.totalorder %s27, 1
      %p129 = por %p127, %p128
      %p130 = scmp.ne.s32.totalorder %s121, %s122
      %p131 = scmp.eq.s32.totalorder %s27, 0
      %p132 = por %p130, %p131
      %p133 = scmp.ne.s32.totalorder %s121, %s122
      %p134 = scmp.eq.s32.totalorder %s28, 1
      %p135 = por %p133, %p134
      %p137 = scmp.ne.s32.totalorder %s122, %s136
      %p138 = scmp.eq.s32.totalorder %s28, 0
      %p139 = por %p137, %p138
      %s141 = sadd.s32 %s140, 1
      %p144 = scmp.eq.s32.totalorder %s22, 1
      %p145 = scmp.ne.s32.totalorder %s140, %s142
      %p146 = scmp.eq.s32.totalorder %s22, 0
      %p147 = por %p145, %p146
      %p148 = scmp.ne.s32.totalorder %s140, %s142
      %p149 = scmp.eq.s32.totalorder %s27, 1
      %p150 = por %p148, %p149
      %p151 = scmp.ne.s32.totalorder %s142, %s143
      %p152 = scmp.eq.s32.totalorder %s27, 0
      %p153 = por %p151, %p152
      %p154 = scmp.ne.s32.totalorder %s142, %s143
      %p155 = scmp.eq.s32.totalorder %s28, 1
      %p156 = por %p154, %p155
      %p158 = scmp.ne.s32.totalorder %s143, %s157
      %p159 = scmp.eq.s32.totalorder %s28, 0
      %p160 = por %p158, %p159
      %s162 = sadd.s32 %s161, 1
      %p165 = scmp.eq.s32.totalorder %s22, 1
      %p166 = scmp.ne.s32.totalorder %s161, %s163
      %p167 = scmp.eq.s32.totalorder %s22, 0
      %p168 = por %p166, %p167
      %p169 = scmp.ne.s32.totalorder %s161, %s163
      %p170 = scmp.eq.s32.totalorder %s27, 1
      %p171 = por %p169, %p170
      %p172 = scmp.ne.s32.totalorder %s163, %s164
      %p173 = scmp.eq.s32.totalorder %s27, 0
      %p174 = por %p172, %p173
      %p175 = scmp.ne.s32.totalorder %s163, %s164
      %p176 = scmp.eq.s32.totalorder %s28, 1
      %p177 = por %p175, %p176
      %p179 = scmp.ne.s32.totalorder %s164, %s178
      %p180 = scmp.eq.s32.totalorder %s28, 0
      %p181 = por %p179, %p180
      %s183 = sadd.s32 %s182, 1
      %p186 = scmp.eq.s32.totalorder %s22, 1
      %p187 = scmp.ne.s32.totalorder %s182, %s184
      %p188 = scmp.eq.s32.totalorder %s22, 0
      %p189 = por %p187, %p188
      %p190 = scmp.ne.s32.totalorder %s182, %s184
      %p191 = scmp.eq.s32.totalorder %s27, 1
      %p192 = por %p190, %p191
      %p193 = scmp.ne.s32.totalorder %s184, %s185
      %p194 = scmp.eq.s32.totalorder %s27, 0
      %p195 = por %p193, %p194
      %p196 = scmp.ne.s32.totalorder %s184, %s185
      %p197 = scmp.eq.s32.totalorder %s28, 1
      %p198 = por %p196, %p197
      %p200 = scmp.ne.s32.totalorder %s185, %s199
      %p201 = scmp.eq.s32.totalorder %s28, 0
      %p202 = por %p200, %p201
      %s204 = sadd.s32 %s203, 1
      %p207 = scmp.eq.s32.totalorder %s22, 1
      %p208 = scmp.ne.s32.totalorder %s203, %s205
      %p209 = scmp.eq.s32.totalorder %s22, 0
      %p210 = por %p208, %p209
      %p211 = scmp.ne.s32.totalorder %s203, %s205
      %p212 = scmp.eq.s32.totalorder %s27, 1
      %p213 = por %p211, %p212
      %p214 = scmp.ne.s32.totalorder %s205, %s206
      %p215 = scmp.eq.s32.totalorder %s27, 0
      %p216 = por %p214, %p215
      %p217 = scmp.ne.s32.totalorder %s205, %s206
      %p218 = scmp.eq.s32.totalorder %s28, 1
      %p219 = por %p217, %p218
      %p221 = scmp.ne.s32.totalorder %s206, %s220
      %p222 = scmp.eq.s32.totalorder %s28, 0
      %p223 = por %p221, %p222
      %s225 = sadd.s32 %s224, 1
      %p228 = scmp.eq.s32.totalorder %s22, 1
      %p229 = scmp.ne.s32.totalorder %s224, %s226
      %p230 = scmp.eq.s32.totalorder %s22, 0
      %p231 = por %p229, %p230
      %p232 = scmp.ne.s32.totalorder %s224, %s226
      %p233 = scmp.eq.s32.totalorder %s27, 1
      %p234 = por %p232, %p233
      %p235 = scmp.ne.s32.totalorder %s226, %s227
      %p236 = scmp.eq.s32.totalorder %s27, 0
      %p237 = por %p235, %p236
      %p238 = scmp.ne.s32.totalorder %s226, %s227
      %p239 = scmp.eq.s32.totalorder %s28, 1
      %p240 = por %p238, %p239
      %p242 = scmp.ne.s32.totalorder %s227, %s241
      %p243 = scmp.eq.s32.totalorder %s28, 0
      %p244 = por %p242, %p243
      %s246 = sadd.s32 %s245, 1
      %p249 = scmp.eq.s32.totalorder %s22, 1
      %p250 = scmp.ne.s32.totalorder %s245, %s247
      %p251 = scmp.eq.s32.totalorder %s22, 0
      %p252 = por %p250, %p251
      %p253 = scmp.ne.s32.totalorder %s245, %s247
      %p254 = scmp.eq.s32.totalorder %s27, 1
      %p255 = por %p253, %p254
      %p256 = scmp.ne.s32.totalorder %s247, %s248
      %p257 = scmp.eq.s32.totalorder %s27, 0
      %p258 = por %p256, %p257
      %p259 = scmp.ne.s32.totalorder %s247, %s248
      %p260 = scmp.eq.s32.totalorder %s28, 1
      %p261 = por %p259, %p260
      %p263 = scmp.ne.s32.totalorder %s248, %s262
      %p264 = scmp.eq.s32.totalorder %s28, 0
      %p265 = por %p263, %p264
      %s267 = sadd.s32 %s266, 1
      %p270 = scmp.eq.s32.totalorder %s22, 1
      %p271 = scmp.ne.s32.totalorder %s266, %s268
      %p272 = scmp.eq.s32.totalorder %s22, 0
      %p273 = por %p271, %p272
      %p274 = scmp.ne.s32.totalorder %s266, %s268
      %p275 = scmp.eq.s32.totalorder %s27, 1
      %p276 = por %p274, %p275
      %p277 = scmp.ne.s32.totalorder %s268, %s269
      %p278 = scmp.eq.s32.totalorder %s27, 0
      %p279 = por %p277, %p278
      %p280 = scmp.ne.s32.totalorder %s268, %s269
      %p281 = scmp.eq.s32.totalorder %s28, 1
      %p282 = por %p280, %p281
      %p284 = scmp.ne.s32.totalorder %s269, %s283
      %p285 = scmp.eq.s32.totalorder %s28, 0
      %p286 = por %p284, %p285
      %s288 = sadd.s32 %s287, 1
      %p291 = scmp.eq.s32.totalorder %s22, 1
      %p292 = scmp.ne.s32.totalorder %s287, %s289
      %p293 = scmp.eq.s32.totalorder %s22, 0
      %p294 = por %p292, %p293
      %p295 = scmp.ne.s32.totalorder %s287, %s289
      %p296 = scmp.eq.s32.totalorder %s27, 1
      %p297 = por %p295, %p296
      %p298 = scmp.ne.s32.totalorder %s289, %s290
      %p299 = scmp.eq.s32.totalorder %s27, 0
      %p300 = por %p298, %p299
      %p301 = scmp.ne.s32.totalorder %s289, %s290
      %p302 = scmp.eq.s32.totalorder %s28, 1
      %p303 = por %p301, %p302
      %p305 = scmp.ne.s32.totalorder %s290, %s304
      %p306 = scmp.eq.s32.totalorder %s28, 0
      %p307 = por %p305, %p306
      %s308 = ssub.s32 %s22, %s29
      %p309 = scmp.eq.s32.totalorder %s308, 0
      %s311 = sadd.s32 %s310, 1
      %s312 = scalar_select %p309, %s310, %s311
      %p315 = pneg %p309
      %p316 = scmp.eq.s32.totalorder %s22, 1
      %p317 = por %p315, %p316
      %p318 = scmp.ne.s32.totalorder %s310, %s313
      %p319 = scmp.eq.s32.totalorder %s22, 0
      %p320 = por %p318, %p319
      %p321 = scmp.ne.s32.totalorder %s310, %s313
      %p322 = scmp.eq.s32.totalorder %s27, 1
      %p323 = por %p321, %p322
      %p324 = scmp.ne.s32.totalorder %s313, %s314
      %p325 = scmp.eq.s32.totalorder %s27, 0
      %p326 = por %p324, %p325
      %p327 = scmp.ne.s32.totalorder %s313, %s314
      %p328 = scmp.eq.s32.totalorder %s28, 1
      %p329 = por %p327, %p328
      %p331 = scmp.ne.s32.totalorder %s314, %s330
      %p332 = scmp.eq.s32.totalorder %s28, 0
      %p333 = por %p331, %p332
      %p334 = scmp.le.s32.totalorder 1, %s22
      %p335 = scmp.lt.s32.totalorder %s22, 3
      %p336 = pnand %p334, %p335
      %p337 = pneg %p336
      // Predicated region
      $region9: #{tpu_custom_call.1} parent=5 // pred_check
        _
      $region10: #{tpu_custom_call.1} parent=5 // pred_check_branch
        %339 = sbr.rel (%p336) target = $region12
      $region11: #{tpu_custom_call.1} parent=5 // pred_region
        %s340 = ssub.s32 %s22, 1
        // Predicated region
        $region13: #{tpu_custom_call.1} parent=11 // pred_check
          %p341 = pneg %p69
        $region14: #{tpu_custom_call.1} parent=11 // pred_check_branch
          %343 = sbr.rel (%p341) target = $region16
        $region15: #{tpu_custom_call.1} parent=11 // pred_region
          _
        $region16: #{tpu_custom_call.1} parent=11 // pred_fallthru
          _
        // Predicated region
        $region17: #{tpu_custom_call.1} parent=11 // pred_check
          %p344 = pneg %p90
        $region18: #{tpu_custom_call.1} parent=11 // pred_check_branch
          %346 = sbr.rel (%p344) target = $region20
        $region19: #{tpu_custom_call.1} parent=11 // pred_region
          _
        $region20: #{tpu_custom_call.1} parent=11 // pred_fallthru
          _
        // Predicated region
        $region21: #{tpu_custom_call.1} parent=11 // pred_check
          %p347 = pneg %p111
        $region22: #{tpu_custom_call.1} parent=11 // pred_check_branch
          %349 = sbr.rel (%p347) target = $region24
        $region23: #{tpu_custom_call.1} parent=11 // pred_region
          _
        $region24: #{tpu_custom_call.1} parent=11 // pred_fallthru
          _
        // Predicated region
        $region25: #{tpu_custom_call.1} parent=11 // pred_check
          %p350 = pneg %p132
        $region26: #{tpu_custom_call.1} parent=11 // pred_check_branch
          %352 = sbr.rel (%p350) target = $region28
        $region27: #{tpu_custom_call.1} parent=11 // pred_region
          _
        $region28: #{tpu_custom_call.1} parent=11 // pred_fallthru
          _
        // Predicated region
        $region29: #{tpu_custom_call.1} parent=11 // pred_check
          %p353 = pneg %p153
        $region30: #{tpu_custom_call.1} parent=11 // pred_check_branch
          %355 = sbr.rel (%p353) target = $region32
        $region31: #{tpu_custom_call.1} parent=11 // pred_region
          _
        $region32: #{tpu_custom_call.1} parent=11 // pred_fallthru
          _
        // Predicated region
        $region33: #{tpu_custom_call.1} parent=11 // pred_check
          %p356 = pneg %p174
        $region34: #{tpu_custom_call.1} parent=11 // pred_check_branch
          %358 = sbr.rel (%p356) target = $region36
        $region35: #{tpu_custom_call.1} parent=11 // pred_region
          _
        $region36: #{tpu_custom_call.1} parent=11 // pred_fallthru
          _
        // Predicated region
        $region37: #{tpu_custom_call.1} parent=11 // pred_check
          %p359 = pneg %p195
        $region38: #{tpu_custom_call.1} parent=11 // pred_check_branch
          %361 = sbr.rel (%p359) target = $region40
        $region39: #{tpu_custom_call.1} parent=11 // pred_region
          _
        $region40: #{tpu_custom_call.1} parent=11 // pred_fallthru
          _
        // Predicated region
        $region41: #{tpu_custom_call.1} parent=11 // pred_check
          %p362 = pneg %p216
        $region42: #{tpu_custom_call.1} parent=11 // pred_check_branch
          %364 = sbr.rel (%p362) target = $region44
        $region43: #{tpu_custom_call.1} parent=11 // pred_region
          _
        $region44: #{tpu_custom_call.1} parent=11 // pred_fallthru
          _
        // Predicated region
        $region45: #{tpu_custom_call.1} parent=11 // pred_check
          %p365 = pneg %p237
        $region46: #{tpu_custom_call.1} parent=11 // pred_check_branch
          %367 = sbr.rel (%p365) target = $region48
        $region47: #{tpu_custom_call.1} parent=11 // pred_region
          _
        $region48: #{tpu_custom_call.1} parent=11 // pred_fallthru
          _
        // Predicated region
        $region49: #{tpu_custom_call.1} parent=11 // pred_check
          %p368 = pneg %p258
        $region50: #{tpu_custom_call.1} parent=11 // pred_check_branch
          %370 = sbr.rel (%p368) target = $region52
        $region51: #{tpu_custom_call.1} parent=11 // pred_region
          _
        $region52: #{tpu_custom_call.1} parent=11 // pred_fallthru
          _
        // Predicated region
        $region53: #{tpu_custom_call.1} parent=11 // pred_check
          %p371 = pneg %p279
        $region54: #{tpu_custom_call.1} parent=11 // pred_check_branch
          %373 = sbr.rel (%p371) target = $region56
        $region55: #{tpu_custom_call.1} parent=11 // pred_region
          _
        $region56: #{tpu_custom_call.1} parent=11 // pred_fallthru
          _
        // Predicated region
        $region57: #{tpu_custom_call.1} parent=11 // pred_check
          %p374 = pneg %p300
        $region58: #{tpu_custom_call.1} parent=11 // pred_check_branch
          %376 = sbr.rel (%p374) target = $region60
        $region59: #{tpu_custom_call.1} parent=11 // pred_region
          _
        $region60: #{tpu_custom_call.1} parent=11 // pred_fallthru
          _
      $region12: #{tpu_custom_call.1} parent=5 // pred_fallthru
        _
      %p377 = scmp.lt.s32.totalorder %s22, 2
      // Predicated region
      $region61: #{tpu_custom_call.1} parent=5 // pred_check
        %p378 = pneg %p377
      $region62: #{tpu_custom_call.1} parent=5 // pred_check_branch
        %380 = sbr.rel (%p378) target = $region64
      $region63: #{tpu_custom_call.1} parent=5 // pred_region
        // Predicated region
        $region65: #{tpu_custom_call.1} parent=63 // pred_check
          %p381 = pneg %p42
        $region66: #{tpu_custom_call.1} parent=63 // pred_check_branch
          %383 = sbr.rel (%p381) target = $region68
        $region67: #{tpu_custom_call.1} parent=63 // pred_region
          %p384 = scmp.lt.s32.totalorder %s22, 1
          %s385 = scalar_select %p384, %s22, 1
          %s386 = smul.addr %s385, 8
          %s387 = scalar_lea.vmem %s0, %s386
        $region68: #{tpu_custom_call.1} parent=63 // pred_fallthru
          _
      $region64: #{tpu_custom_call.1} parent=5 // pred_fallthru
        _
      %p388 = scmp.le.s32.totalorder 1, %s22
      %p389 = scmp.lt.s32.totalorder %s22, 3
      %p390 = pnand %p388, %p389
      %p391 = pneg %p390
      // Predicated region
      $region69: #{tpu_custom_call.1} parent=5 // pred_check
        _
      $region70: #{tpu_custom_call.1} parent=5 // pred_check_branch
        %393 = sbr.rel (%p390) target = $region72
      $region71: #{tpu_custom_call.1} parent=5 // pred_region
        %s394 = ssub.s32 %s22, 1
        %p395 = scmp.lt.s32.totalorder %s27, 1
        %s396 = scalar_select %p395, %s27, 1
        %s397 = smul.addr %s396, 8
        %s398 = scalar_lea.vmem %s0, %s397
        %p399 = pneg %p48
        %p400 = pneg %p45
        %p401 = pneg %p69
        %p402 = pneg %p66
        %p403 = pneg %p90
        %p404 = pneg %p87
        %p405 = pneg %p111
        %p406 = pneg %p108
        %p407 = pneg %p132
        %p408 = pneg %p129
        %p409 = pneg %p153
        %p410 = pneg %p150
        %p411 = pneg %p174
        %p412 = pneg %p171
        %p413 = pneg %p195
        %p414 = pneg %p192
        %p415 = pneg %p216
        %p416 = pneg %p213
        %p417 = pneg %p237
        %p418 = pneg %p234
        %p419 = pneg %p258
        %p420 = pneg %p255
        %p421 = pneg %p279
        %p422 = pneg %p276
        %p423 = pneg %p300
        %p424 = pneg %p297
        %p425 = pneg %p326
        %p426 = pneg %p323
        %s427 = sand.u32 %s313, 1
        %s428 = scalar_lea.sflag [#allocation3], %s427
        %s429 = sand.u32 %s313, 1
        %s430 = smul.addr %s429, 8
        %s431 = scalar_lea.vmem [#allocation2], %s430
        %p432 = scmp.lt.s32.totalorder %s27, 1
        %s433 = scalar_select %p432, %s27, 1
        %s434 = smul.addr %s433, 8
        %s435 = scalar_lea.vmem %s0, %s434
        %v437 = vld [vmem:[%s435] sm:$0xff]
        %v438 = vld [vmem:[%s1] sm:$0x1]
        %v439 = vld [vmem:[%s2] sm:$0x1]
        %vm440 = vcmask 261120
        %v441 = vsel %vm440, %v437, 0.0
        %442 = vadd.xlane.f32.xlu0 %v441
        %v443 = vpop.xlane.xlu0 %442
        %v444 = vrcp.pop 32.0
        %v445 = vmul.f32 %v443, %v444
        %v446 = vsub.f32 %v437, %v445
        %v447 = vmul.f32 %v446, %v446
        %v448 = vsel %vm440, %v447, 0.0
        %449 = vadd.xlane.f32.xlu0 %v448
        %v450 = vpop.xlane.xlu0 %449
        %v451 = vmul.f32 %v450, %v444
        %v452 = vadd.f32 %v451, 1e-05
        %v453 = vrsqrt.pop %v452
        %v454 = vmul.f32 %v446, %v453
        %v456 = vlaneseq
        %v457 = vshrl.u32 %v456, 7
        %v458 = vsub.s32 0, %v457
        %v459 = vrot.slane %v438, %v458
        %v461 = vmul.f32 %v454, %v459
        %v463 = vlaneseq
        %v464 = vshrl.u32 %v463, 7
        %v465 = vsub.s32 0, %v464
        %v466 = vrot.slane %v439, %v465
        %v468 = vadd.f32 %v461, %v466
        %v469 = vpack.c.bf16 %v468, %v468
        %v470 = vld [vmem:[%s3] sm:$0xf]
        %v471 = vld [vmem:[%s3 + $0x4] sm:$0xf]
        %v472 = vld [vmem:[%s3 + $0x8] sm:$0xf]
        %v473 = vld [vmem:[%s3 + $0xc] sm:$0xf]
        %v474 = vld [vmem:[%s4] sm:$0x1]
        %v476 = vlaneseq
        %v477 = vshrl.u32 %v476, 7
        %v478 = vsub.s32 0, %v477
        %v479 = vrot.slane %v474, %v478
        %v485 = vunpack.c.l.b16 %v470
        %v486 = vunpack.c.l.b16 %v471
        %v487 = vunpack.c.l.b16 %v472
        %v488 = vunpack.c.l.b16 %v473
        %v489 = vpack.c.b16 %v486, %v485
        %v490 = vpack.c.b16 %v488, %v487
        %v494 = vsel %vm440, %v469, 0
        %496 = vmatprep.subr.bf16.mxu0 0
        %497 = vmatpush1.bf16.msra.mxu0 0
        %498 = vmatprep.subr.bf16.mxu0 0
        %499 = vmatpush1.bf16.msra.mxu0 0
        %500 = vmatprep.subr.bf16.mxu0 0
        %501 = vmatpush1.bf16.msra.mxu0 0
        %502 = vmatprep.subr.bf16.mxu0 0
        %503 = vmatpush1.bf16.msra.mxu0 0
        %504 = vmatprep.subr.bf16.mxu0 0
        %505 = vmatpush1.bf16.msra.mxu0 0
        %506 = vmatprep.subr.bf16.mxu0 0
        %507 = vmatpush1.bf16.msra.mxu0 0
        %508 = vmatprep.subr.bf16.mxu0 0
        %509 = vmatpush1.bf16.msra.mxu0 %v490
        %510 = vmatprep.subr.bf16.mxu0 0
        %511 = vmatpush1.bf16.msra.mxu0 %v489
        %512 = vmatprep.subr.bf16.mxu0 0
        %513 = vmatpush2.bf16.msra.mxu0 0
        %514 = vmatprep.subr.bf16.mxu0 0
        %515 = vmatpush2.bf16.msra.mxu0 0
        %516 = vmatprep.subr.bf16.mxu0 0
        %517 = vmatpush2.bf16.msra.mxu0 0
        %518 = vmatprep.subr.bf16.mxu0 0
        %519 = vmatpush2.bf16.msra.mxu0 0
        %520 = vmatprep.subr.bf16.mxu0 0
        %521 = vmatpush2.bf16.msra.mxu0 0
        %522 = vmatprep.subr.bf16.mxu0 0
        %523 = vmatpush2.bf16.msra.mxu0 0
        %524 = vmatprep.subr.bf16.mxu0 0
        %525 = vmatpush2.bf16.msra.mxu0 0
        %526 = vmatprep.subr.bf16.mxu0 0
        %527 = vmatpush2.bf16.msra.mxu0 0
        %528 = vmatprep.mubr.bf16.mxu0 0
        %529 = vmatmul.mubr.bf16.gmra.mxu0 %v494
        %v530 = vpop.f32.mrf.mxu0
        %v531 = vadd.f32 %v479, %v530
        %v532 = vpop.f32.mrf.mxu0
        %v533 = vpop.f32.mrf.mxu0
        %v534 = vpop.f32.mrf.mxu0
        %535 = vdwg.mxu0
        %537 = vrot.lane.b32.xlu0 %v531, 120
        %v538 = vpop.permute.xlu0 %537
        %540 = vrot.lane.b32.xlu0 %v531, 112
        %v541 = vpop.permute.xlu0 %540
        %543 = vrot.lane.b32.xlu0 %v531, 104
        %v544 = vpop.permute.xlu0 %543
        %v546 = vcombine.low %v531, %v541
        %v547 = vcombine.high %v531, %v541
        %v549 = vunpack.c.l.s4 1983009808
        %v550 = vunpack.c.0.s8 %v549
        %v551 = vlaneseq
        %v552 = vshrl.u32 %v551, 7
        %v553 = vsub.s32 %v550, %v552
        %v554 = vrot.slane %v546, %v553
        %v556 = vunpack.c.l.s4 1983009808
        %v557 = vunpack.c.0.s8 %v556
        %v558 = vlaneseq
        %v559 = vshrl.u32 %v558, 7
        %v560 = vsub.s32 %v557, %v559
        %v561 = vrot.slane %v547, %v560
        %v562 = vcombine.low %v538, %v544
        %v563 = vcombine.high %v538, %v544
        %v565 = vunpack.c.l.s4 1983009808
        %v566 = vunpack.c.0.s8 %v565
        %v567 = vlaneseq
        %v568 = vshrl.u32 %v567, 7
        %v569 = vsub.s32 %v566, %v568
        %v570 = vrot.slane %v562, %v569
        %v572 = vunpack.c.l.s4 1983009808
        %v573 = vunpack.c.0.s8 %v572
        %v574 = vlaneseq
        %v575 = vshrl.u32 %v574, 7
        %v576 = vsub.s32 %v573, %v575
        %v577 = vrot.slane %v563, %v576
        %v578 = vcombine.low %v554, %v570
        %v579 = vcombine.high %v554, %v570
        %v581 = vunpack.c.l.s4 1934713408
        %v582 = vunpack.c.0.s8 %v581
        %v583 = vlaneseq
        %v584 = vshrl.u32 %v583, 7
        %v585 = vsub.s32 %v582, %v584
        %v586 = vrot.slane %v578, %v585
        %v588 = vunpack.c.l.s4 1934713408
        %v589 = vunpack.c.0.s8 %v588
        %v590 = vlaneseq
        %v591 = vshrl.u32 %v590, 7
        %v592 = vsub.s32 %v589, %v591
        %v593 = vrot.slane %v579, %v592
        %v594 = vcombine.low %v561, %v577
        %v595 = vcombine.high %v561, %v577
        %v597 = vunpack.c.l.s4 1934713408
        %v598 = vunpack.c.0.s8 %v597
        %v599 = vlaneseq
        %v600 = vshrl.u32 %v599, 7
        %v601 = vsub.s32 %v598, %v600
        %v602 = vrot.slane %v594, %v601
        %v604 = vunpack.c.l.s4 1934713408
        %v605 = vunpack.c.0.s8 %v604
        %v606 = vlaneseq
        %v607 = vshrl.u32 %v606, 7
        %v608 = vsub.s32 %v605, %v607
        %v609 = vrot.slane %v595, %v608
        %v610 = vcombine.high %v586, 0.0
        %v611 = vcombine.high %v593, 0.0
        %v612 = vcombine.high %v602, 0.0
        %v613 = vcombine.high %v609, 0.0
        %614 = vrot.lane.b32.xlu0 %v531, 96
        %v615 = vpop.permute.xlu0 %614
        %616 = vrot.lane.b32.xlu0 %v538, 96
        %v617 = vpop.permute.xlu0 %616
        %618 = vrot.lane.b32.xlu0 %v541, 96
        %v619 = vpop.permute.xlu0 %618
        %620 = vrot.lane.b32.xlu0 %v544, 96
        %v621 = vpop.permute.xlu0 %620
        %v626 = vcombine.low %v615, %v619
        %v627 = vcombine.high %v615, %v619
        %v629 = vunpack.c.l.s4 1983009808
        %v630 = vunpack.c.0.s8 %v629
        %v631 = vlaneseq
        %v632 = vshrl.u32 %v631, 7
        %v633 = vsub.s32 %v630, %v632
        %v634 = vrot.slane %v626, %v633
        %v636 = vunpack.c.l.s4 1983009808
        %v637 = vunpack.c.0.s8 %v636
        %v638 = vlaneseq
        %v639 = vshrl.u32 %v638, 7
        %v640 = vsub.s32 %v637, %v639
        %v641 = vrot.slane %v627, %v640
        %v642 = vcombine.low %v617, %v621
        %v643 = vcombine.high %v617, %v621
        %v645 = vunpack.c.l.s4 1983009808
        %v646 = vunpack.c.0.s8 %v645
        %v647 = vlaneseq
        %v648 = vshrl.u32 %v647, 7
        %v649 = vsub.s32 %v646, %v648
        %v650 = vrot.slane %v642, %v649
        %v652 = vunpack.c.l.s4 1983009808
        %v653 = vunpack.c.0.s8 %v652
        %v654 = vlaneseq
        %v655 = vshrl.u32 %v654, 7
        %v656 = vsub.s32 %v653, %v655
        %v657 = vrot.slane %v643, %v656
        %v658 = vcombine.low %v634, %v650
        %v659 = vcombine.high %v634, %v650
        %v661 = vunpack.c.l.s4 1934713408
        %v662 = vunpack.c.0.s8 %v661
        %v663 = vlaneseq
        %v664 = vshrl.u32 %v663, 7
        %v665 = vsub.s32 %v662, %v664
        %v666 = vrot.slane %v658, %v665
        %v668 = vunpack.c.l.s4 1934713408
        %v669 = vunpack.c.0.s8 %v668
        %v670 = vlaneseq
        %v671 = vshrl.u32 %v670, 7
        %v672 = vsub.s32 %v669, %v671
        %v673 = vrot.slane %v659, %v672
        %v674 = vcombine.low %v641, %v657
        %v675 = vcombine.high %v641, %v657
        %v677 = vunpack.c.l.s4 1934713408
        %v678 = vunpack.c.0.s8 %v677
        %v679 = vlaneseq
        %v680 = vshrl.u32 %v679, 7
        %v681 = vsub.s32 %v678, %v680
        %v682 = vrot.slane %v674, %v681
        %v684 = vunpack.c.l.s4 1934713408
        %v685 = vunpack.c.0.s8 %v684
        %v686 = vlaneseq
        %v687 = vshrl.u32 %v686, 7
        %v688 = vsub.s32 %v685, %v687
        %v689 = vrot.slane %v675, %v688
        %v690 = vcombine.high %v666, 0.0
        %v691 = vcombine.high %v673, 0.0
        %v692 = vcombine.high %v682, 0.0
        %v693 = vcombine.high %v689, 0.0
        %694 = vrot.lane.b32.xlu0 %v531, 64
        %v695 = vpop.permute.xlu0 %694
        %696 = vrot.lane.b32.xlu0 %v538, 64
        %v697 = vpop.permute.xlu0 %696
        %698 = vrot.lane.b32.xlu0 %v541, 64
        %v699 = vpop.permute.xlu0 %698
        %700 = vrot.lane.b32.xlu0 %v544, 64
        %v701 = vpop.permute.xlu0 %700
        %v706 = vcombine.low %v695, %v699
        %v707 = vcombine.high %v695, %v699
        %v709 = vunpack.c.l.s4 1983009808
        %v710 = vunpack.c.0.s8 %v709
        %v711 = vlaneseq
        %v712 = vshrl.u32 %v711, 7
        %v713 = vsub.s32 %v710, %v712
        %v714 = vrot.slane %v706, %v713
        %v716 = vunpack.c.l.s4 1983009808
        %v717 = vunpack.c.0.s8 %v716
        %v718 = vlaneseq
        %v719 = vshrl.u32 %v718, 7
        %v720 = vsub.s32 %v717, %v719
        %v721 = vrot.slane %v707, %v720
        %v722 = vcombine.low %v697, %v701
        %v723 = vcombine.high %v697, %v701
        %v725 = vunpack.c.l.s4 1983009808
        %v726 = vunpack.c.0.s8 %v725
        %v727 = vlaneseq
        %v728 = vshrl.u32 %v727, 7
        %v729 = vsub.s32 %v726, %v728
        %v730 = vrot.slane %v722, %v729
        %v732 = vunpack.c.l.s4 1983009808
        %v733 = vunpack.c.0.s8 %v732
        %v734 = vlaneseq
        %v735 = vshrl.u32 %v734, 7
        %v736 = vsub.s32 %v733, %v735
        %v737 = vrot.slane %v723, %v736
        %v738 = vcombine.low %v714, %v730
        %v739 = vcombine.high %v714, %v730
        %v741 = vunpack.c.l.s4 1934713408
        %v742 = vunpack.c.0.s8 %v741
        %v743 = vlaneseq
        %v744 = vshrl.u32 %v743, 7
        %v745 = vsub.s32 %v742, %v744
        %v746 = vrot.slane %v738, %v745
        %v748 = vunpack.c.l.s4 1934713408
        %v749 = vunpack.c.0.s8 %v748
        %v750 = vlaneseq
        %v751 = vshrl.u32 %v750, 7
        %v752 = vsub.s32 %v749, %v751
        %v753 = vrot.slane %v739, %v752
        %v754 = vcombine.low %v721, %v737
        %v755 = vcombine.high %v721, %v737
        %v757 = vunpack.c.l.s4 1934713408
        %v758 = vunpack.c.0.s8 %v757
        %v759 = vlaneseq
        %v760 = vshrl.u32 %v759, 7
        %v761 = vsub.s32 %v758, %v760
        %v762 = vrot.slane %v754, %v761
        %v764 = vunpack.c.l.s4 1934713408
        %v765 = vunpack.c.0.s8 %v764
        %v766 = vlaneseq
        %v767 = vshrl.u32 %v766, 7
        %v768 = vsub.s32 %v765, %v767
        %v769 = vrot.slane %v755, %v768
        %v770 = vcombine.high %v746, 0.0
        %v771 = vcombine.high %v753, 0.0
        %v772 = vcombine.high %v762, 0.0
        %v773 = vcombine.high %v769, 0.0
        %v774 = vlaneseq
        %v775 = vshrl.u32 %v774, 7
        %v776 = vlaneseq
        %v777 = vand.u32 %v776, 127
        %vm778 = vcmp.le.s32.totalorder %v777, %v775
        %v779 = vpack.c.bf16 %v586, %v586
        %v780 = vpack.c.bf16 %v610, %v610
        %v781 = vpack.c.bf16 %v593, %v593
        %v782 = vpack.c.bf16 %v611, %v611
        %v783 = vpack.c.bf16 %v602, %v602
        %v784 = vpack.c.bf16 %v612, %v612
        %v785 = vpack.c.bf16 %v609, %v609
        %v786 = vpack.c.bf16 %v613, %v613
        %v787 = vpack.c.bf16 %v666, %v666
        %v788 = vpack.c.bf16 %v690, %v690
        %v789 = vpack.c.bf16 %v673, %v673
        %v790 = vpack.c.bf16 %v691, %v691
        %v791 = vpack.c.bf16 %v682, %v682
        %v792 = vpack.c.bf16 %v692, %v692
        %v793 = vpack.c.bf16 %v689, %v689
        %v794 = vpack.c.bf16 %v693, %v693
        %v795 = vcombine.low %v779, %v783
        %v797 = vunpack.c.l.s4 1983009808
        %v798 = vunpack.c.0.s8 %v797
        %v799 = vlaneseq
        %v800 = vshrl.u32 %v799, 7
        %v801 = vsub.s32 %v798, %v800
        %v802 = vrot.slane %v795, %v801
        %v803 = vcombine.low %v781, %v785
        %v805 = vunpack.c.l.s4 1983009808
        %v806 = vunpack.c.0.s8 %v805
        %v807 = vlaneseq
        %v808 = vshrl.u32 %v807, 7
        %v809 = vsub.s32 %v806, %v808
        %v810 = vrot.slane %v803, %v809
        %v811 = vcombine.low %v802, %v810
        %v813 = vunpack.c.l.s4 1934713408
        %v814 = vunpack.c.0.s8 %v813
        %v815 = vlaneseq
        %v816 = vshrl.u32 %v815, 7
        %v817 = vsub.s32 %v814, %v816
        %v818 = vrot.slane %v811, %v817
        %v819 = vcombine.high %v818, 0
        %v820 = vcombine.low %v780, %v784
        %v822 = vunpack.c.l.s4 1983009808
        %v823 = vunpack.c.0.s8 %v822
        %v824 = vlaneseq
        %v825 = vshrl.u32 %v824, 7
        %v826 = vsub.s32 %v823, %v825
        %v827 = vrot.slane %v820, %v826
        %v828 = vcombine.low %v782, %v786
        %v830 = vunpack.c.l.s4 1983009808
        %v831 = vunpack.c.0.s8 %v830
        %v832 = vlaneseq
        %v833 = vshrl.u32 %v832, 7
        %v834 = vsub.s32 %v831, %v833
        %v835 = vrot.slane %v828, %v834
        %v836 = vcombine.low %v827, %v835
        %v838 = vunpack.c.l.s4 1934713408
        %v839 = vunpack.c.0.s8 %v838
        %v840 = vlaneseq
        %v841 = vshrl.u32 %v840, 7
        %v842 = vsub.s32 %v839, %v841
        %v843 = vrot.slane %v836, %v842
        %v844 = vcombine.high %v843, 0
        %v847 = vpack.i.b16 %v843, %v818
        %v848 = vshrl.u32 %v818, 16
        %v849 = vshrl.u32 %v843, 16
        %v850 = vpack.i.b16 %v849, %v848
        %v853 = vpack.i.b16 %v844, %v819
        %v854 = vshrl.u32 %v819, 16
        %v855 = vshrl.u32 %v844, 16
        %v856 = vpack.i.b16 %v855, %v854
        %857 = vxpose.xlu0.c.b16.start [1/8] %v787, 128
        %858 = vxpose.xlu0.c.b16.cont [2/8] 0, 128
        %859 = vxpose.xlu0.c.b16.cont [3/8] 0, 128
        %860 = vxpose.xlu0.c.b16.cont [4/8] 0, 128
        %861 = vxpose.xlu0.c.b16.cont [5/8] 0, 128
        %862 = vxpose.xlu0.c.b16.cont [6/8] 0, 128
        %863 = vxpose.xlu0.c.b16.cont [7/8] 0, 128
        %864 = vxpose.xlu0.c.b16.end [8/8] 0, 128
        %v865 = vpop.trf.xlu0
        %v866 = vpop.trf.xlu0
        %v867 = vpop.trf.xlu0
        %v868 = vpop.trf.xlu0
        %v869 = vpop.trf.xlu0
        %v870 = vpop.trf.xlu0
        %v871 = vpop.trf.xlu0
        %v872 = vpop.trf.xlu0
        %873 = vxpose.xlu0.c.b16.start [1/8] %v788, 128
        %874 = vxpose.xlu0.c.b16.cont [2/8] 0, 128
        %875 = vxpose.xlu0.c.b16.cont [3/8] 0, 128
        %876 = vxpose.xlu0.c.b16.cont [4/8] 0, 128
        %877 = vxpose.xlu0.c.b16.cont [5/8] 0, 128
        %878 = vxpose.xlu0.c.b16.cont [6/8] 0, 128
        %879 = vxpose.xlu0.c.b16.cont [7/8] 0, 128
        %880 = vxpose.xlu0.c.b16.end [8/8] 0, 128
        %v881 = vpop.trf.xlu0
        %v882 = vpop.trf.xlu0
        %v883 = vpop.trf.xlu0
        %v884 = vpop.trf.xlu0
        %v885 = vpop.trf.xlu0
        %v886 = vpop.trf.xlu0
        %v887 = vpop.trf.xlu0
        %v888 = vpop.trf.xlu0
        %889 = vxpose.xlu0.c.b16.start [1/8] %v789, 128
        %890 = vxpose.xlu0.c.b16.cont [2/8] 0, 128
        %891 = vxpose.xlu0.c.b16.cont [3/8] 0, 128
        %892 = vxpose.xlu0.c.b16.cont [4/8] 0, 128
        %893 = vxpose.xlu0.c.b16.cont [5/8] 0, 128
        %894 = vxpose.xlu0.c.b16.cont [6/8] 0, 128
        %895 = vxpose.xlu0.c.b16.cont [7/8] 0, 128
        %896 = vxpose.xlu0.c.b16.end [8/8] 0, 128
        %v897 = vpop.trf.xlu0
        %v898 = vpop.trf.xlu0
        %v899 = vpop.trf.xlu0
        %v900 = vpop.trf.xlu0
        %v901 = vpop.trf.xlu0
        %v902 = vpop.trf.xlu0
        %v903 = vpop.trf.xlu0
        %v904 = vpop.trf.xlu0
        %905 = vxpose.xlu0.c.b16.start [1/8] %v790, 128
        %906 = vxpose.xlu0.c.b16.cont [2/8] 0, 128
        %907 = vxpose.xlu0.c.b16.cont [3/8] 0, 128
        %908 = vxpose.xlu0.c.b16.cont [4/8] 0, 128
        %909 = vxpose.xlu0.c.b16.cont [5/8] 0, 128
        %910 = vxpose.xlu0.c.b16.cont [6/8] 0, 128
        %911 = vxpose.xlu0.c.b16.cont [7/8] 0, 128
        %912 = vxpose.xlu0.c.b16.end [8/8] 0, 128
        %v913 = vpop.trf.xlu0
        %v914 = vpop.trf.xlu0
        %v915 = vpop.trf.xlu0
        %v916 = vpop.trf.xlu0
        %v917 = vpop.trf.xlu0
        %v918 = vpop.trf.xlu0
        %v919 = vpop.trf.xlu0
        %v920 = vpop.trf.xlu0
        %921 = vxpose.xlu0.c.b16.start [1/8] %v791, 128
        %922 = vxpose.xlu0.c.b16.cont [2/8] 0, 128
        %923 = vxpose.xlu0.c.b16.cont [3/8] 0, 128
        %924 = vxpose.xlu0.c.b16.cont [4/8] 0, 128
        %925 = vxpose.xlu0.c.b16.cont [5/8] 0, 128
        %926 = vxpose.xlu0.c.b16.cont [6/8] 0, 128
        %927 = vxpose.xlu0.c.b16.cont [7/8] 0, 128
        %928 = vxpose.xlu0.c.b16.end [8/8] 0, 128
        %v929 = vpop.trf.xlu0
        %v930 = vpop.trf.xlu0
        %v931 = vpop.trf.xlu0
        %v932 = vpop.trf.xlu0
        %v933 = vpop.trf.xlu0
        %v934 = vpop.trf.xlu0
        %v935 = vpop.trf.xlu0
        %v936 = vpop.trf.xlu0
        %937 = vxpose.xlu0.c.b16.start [1/8] %v792, 128
        %938 = vxpose.xlu0.c.b16.cont [2/8] 0, 128
        %939 = vxpose.xlu0.c.b16.cont [3/8] 0, 128
        %940 = vxpose.xlu0.c.b16.cont [4/8] 0, 128
        %941 = vxpose.xlu0.c.b16.cont [5/8] 0, 128
        %942 = vxpose.xlu0.c.b16.cont [6/8] 0, 128
        %943 = vxpose.xlu0.c.b16.cont [7/8] 0, 128
        %944 = vxpose.xlu0.c.b16.end [8/8] 0, 128
        %v945 = vpop.trf.xlu0
        %v946 = vpop.trf.xlu0
        %v947 = vpop.trf.xlu0
        %v948 = vpop.trf.xlu0
        %v949 = vpop.trf.xlu0
        %v950 = vpop.trf.xlu0
        %v951 = vpop.trf.xlu0
        %v952 = vpop.trf.xlu0
        %953 = vxpose.xlu0.c.b16.start [1/8] %v793, 128
        %954 = vxpose.xlu0.c.b16.cont [2/8] 0, 128
        %955 = vxpose.xlu0.c.b16.cont [3/8] 0, 128
        %956 = vxpose.xlu0.c.b16.cont [4/8] 0, 128
        %957 = vxpose.xlu0.c.b16.cont [5/8] 0, 128
        %958 = vxpose.xlu0.c.b16.cont [6/8] 0, 128
        %959 = vxpose.xlu0.c.b16.cont [7/8] 0, 128
        %960 = vxpose.xlu0.c.b16.end [8/8] 0, 128
        %v961 = vpop.trf.xlu0
        %v962 = vpop.trf.xlu0
        %v963 = vpop.trf.xlu0
        %v964 = vpop.trf.xlu0
        %v965 = vpop.trf.xlu0
        %v966 = vpop.trf.xlu0
        %v967 = vpop.trf.xlu0
        %v968 = vpop.trf.xlu0
        %969 = vxpose.xlu0.c.b16.start [1/8] %v794, 128
        %970 = vxpose.xlu0.c.b16.cont [2/8] 0, 128
        %971 = vxpose.xlu0.c.b16.cont [3/8] 0, 128
        %972 = vxpose.xlu0.c.b16.cont [4/8] 0, 128
        %973 = vxpose.xlu0.c.b16.cont [5/8] 0, 128
        %974 = vxpose.xlu0.c.b16.cont [6/8] 0, 128
        %975 = vxpose.xlu0.c.b16.cont [7/8] 0, 128
        %976 = vxpose.xlu0.c.b16.end [8/8] 0, 128
        %v977 = vpop.trf.xlu0
        %v978 = vpop.trf.xlu0
        %v979 = vpop.trf.xlu0
        %v980 = vpop.trf.xlu0
        %v981 = vpop.trf.xlu0
        %v982 = vpop.trf.xlu0
        %v983 = vpop.trf.xlu0
        %v984 = vpop.trf.xlu0
        %v985 = vcombine.low %v865, %v929
        %v987 = vunpack.c.l.s4 1983009808
        %v988 = vunpack.c.0.s8 %v987
        %v989 = vlaneseq
        %v990 = vshrl.u32 %v989, 7
        %v991 = vsub.s32 %v988, %v990
        %v992 = vrot.slane %v985, %v991
        %v993 = vcombine.low %v897, %v961
        %v995 = vunpack.c.l.s4 1983009808
        %v996 = vunpack.c.0.s8 %v995
        %v997 = vlaneseq
        %v998 = vshrl.u32 %v997, 7
        %v999 = vsub.s32 %v996, %v998
        %v1000 = vrot.slane %v993, %v999
        %v1001 = vcombine.low %v992, %v1000
        %v1002 = vcombine.high %v992, %v1000
        %v1004 = vunpack.c.l.s4 1934713408
        %v1005 = vunpack.c.0.s8 %v1004
        %v1006 = vlaneseq
        %v1007 = vshrl.u32 %v1006, 7
        %v1008 = vsub.s32 %v1005, %v1007
        %v1009 = vrot.slane %v1001, %v1008
        %v1011 = vunpack.c.l.s4 1934713408
        %v1012 = vunpack.c.0.s8 %v1011
        %v1013 = vlaneseq
        %v1014 = vshrl.u32 %v1013, 7
        %v1015 = vsub.s32 %v1012, %v1014
        %v1016 = vrot.slane %v1002, %v1015
        %v1017 = vcombine.high %v1009, 0
        %v1018 = vcombine.high %v1016, 0
        %v1019 = vcombine.low %v881, %v945
        %v1021 = vunpack.c.l.s4 1983009808
        %v1022 = vunpack.c.0.s8 %v1021
        %v1023 = vlaneseq
        %v1024 = vshrl.u32 %v1023, 7
        %v1025 = vsub.s32 %v1022, %v1024
        %v1026 = vrot.slane %v1019, %v1025
        %v1027 = vcombine.low %v913, %v977
        %v1029 = vunpack.c.l.s4 1983009808
        %v1030 = vunpack.c.0.s8 %v1029
        %v1031 = vlaneseq
        %v1032 = vshrl.u32 %v1031, 7
        %v1033 = vsub.s32 %v1030, %v1032
        %v1034 = vrot.slane %v1027, %v1033
        %v1035 = vcombine.low %v1026, %v1034
        %v1036 = vcombine.high %v1026, %v1034
        %v1038 = vunpack.c.l.s4 1934713408
        %v1039 = vunpack.c.0.s8 %v1038
        %v1040 = vlaneseq
        %v1041 = vshrl.u32 %v1040, 7
        %v1042 = vsub.s32 %v1039, %v1041
        %v1043 = vrot.slane %v1035, %v1042
        %v1045 = vunpack.c.l.s4 1934713408
        %v1046 = vunpack.c.0.s8 %v1045
        %v1047 = vlaneseq
        %v1048 = vshrl.u32 %v1047, 7
        %v1049 = vsub.s32 %v1046, %v1048
        %v1050 = vrot.slane %v1036, %v1049
        %v1051 = vcombine.high %v1043, 0
        %v1052 = vcombine.high %v1050, 0
        %v1055 = vpack.i.b16 %v1043, %v1009
        %v1057 = vshrl.u32 %v1009, 16
        %v1058 = vshrl.u32 %v1043, 16
        %v1059 = vpack.i.b16 %v1058, %v1057
        %v1063 = vpack.i.b16 %v1051, %v1017
        %v1065 = vshrl.u32 %v1017, 16
        %v1066 = vshrl.u32 %v1051, 16
        %v1067 = vpack.i.b16 %v1066, %v1065
        %v1071 = vpack.i.b16 %v1050, %v1016
        %v1073 = vshrl.u32 %v1016, 16
        %v1074 = vshrl.u32 %v1050, 16
        %v1075 = vpack.i.b16 %v1074, %v1073
        %v1079 = vpack.i.b16 %v1052, %v1018
        %v1081 = vshrl.u32 %v1018, 16
        %v1082 = vshrl.u32 %v1052, 16
        %v1083 = vpack.i.b16 %v1082, %v1081
        %1085 = vxpose.xlu0.c.b16.start [1/8] %v1055, 128
        %1086 = vxpose.xlu0.c.b16.cont [2/8] 0, 128
        %1087 = vxpose.xlu0.c.b16.cont [3/8] 0, 128
        %1088 = vxpose.xlu0.c.b16.cont [4/8] 0, 128
        %1089 = vxpose.xlu0.c.b16.cont [5/8] 0, 128
        %1090 = vxpose.xlu0.c.b16.cont [6/8] 0, 128
        %1091 = vxpose.xlu0.c.b16.cont [7/8] 0, 128
        %1092 = vxpose.xlu0.c.b16.end [8/8] 0, 128
        %v1093 = vpop.trf.xlu0
        %v1094 = vpop.trf.xlu0
        %v1095 = vpop.trf.xlu0
        %v1096 = vpop.trf.xlu0
        %v1097 = vpop.trf.xlu0
        %v1098 = vpop.trf.xlu0
        %v1099 = vpop.trf.xlu0
        %v1100 = vpop.trf.xlu0
        %1101 = vxpose.xlu0.c.b16.start [1/8] %v1059, 128
        %1102 = vxpose.xlu0.c.b16.cont [2/8] 0, 128
        %1103 = vxpose.xlu0.c.b16.cont [3/8] 0, 128
        %1104 = vxpose.xlu0.c.b16.cont [4/8] 0, 128
        %1105 = vxpose.xlu0.c.b16.cont [5/8] 0, 128
        %1106 = vxpose.xlu0.c.b16.cont [6/8] 0, 128
        %1107 = vxpose.xlu0.c.b16.cont [7/8] 0, 128
        %1108 = vxpose.xlu0.c.b16.end [8/8] 0, 128
        %v1109 = vpop.trf.xlu0
        %v1110 = vpop.trf.xlu0
        %v1111 = vpop.trf.xlu0
        %v1112 = vpop.trf.xlu0
        %v1113 = vpop.trf.xlu0
        %v1114 = vpop.trf.xlu0
        %v1115 = vpop.trf.xlu0
        %v1116 = vpop.trf.xlu0
        %1117 = vxpose.xlu0.c.b16.start [1/8] %v1063, 128
        %1118 = vxpose.xlu0.c.b16.cont [2/8] 0, 128
        %1119 = vxpose.xlu0.c.b16.cont [3/8] 0, 128
        %1120 = vxpose.xlu0.c.b16.cont [4/8] 0, 128
        %1121 = vxpose.xlu0.c.b16.cont [5/8] 0, 128
        %1122 = vxpose.xlu0.c.b16.cont [6/8] 0, 128
        %1123 = vxpose.xlu0.c.b16.cont [7/8] 0, 128
        %1124 = vxpose.xlu0.c.b16.end [8/8] 0, 128
        %v1125 = vpop.trf.xlu0
        %v1126 = vpop.trf.xlu0
        %v1127 = vpop.trf.xlu0
        %v1128 = vpop.trf.xlu0
        %v1129 = vpop.trf.xlu0
        %v1130 = vpop.trf.xlu0
        %v1131 = vpop.trf.xlu0
        %v1132 = vpop.trf.xlu0
        %1133 = vxpose.xlu0.c.b16.start [1/8] %v1067, 128
        %1134 = vxpose.xlu0.c.b16.cont [2/8] 0, 128
        %1135 = vxpose.xlu0.c.b16.cont [3/8] 0, 128
        %1136 = vxpose.xlu0.c.b16.cont [4/8] 0, 128
        %1137 = vxpose.xlu0.c.b16.cont [5/8] 0, 128
        %1138 = vxpose.xlu0.c.b16.cont [6/8] 0, 128
        %1139 = vxpose.xlu0.c.b16.cont [7/8] 0, 128
        %1140 = vxpose.xlu0.c.b16.end [8/8] 0, 128
        %v1141 = vpop.trf.xlu0
        %v1142 = vpop.trf.xlu0
        %v1143 = vpop.trf.xlu0
        %v1144 = vpop.trf.xlu0
        %v1145 = vpop.trf.xlu0
        %v1146 = vpop.trf.xlu0
        %v1147 = vpop.trf.xlu0
        %v1148 = vpop.trf.xlu0
        %1149 = vxpose.xlu0.c.b16.start [1/8] %v1071, 128
        %1150 = vxpose.xlu0.c.b16.cont [2/8] 0, 128
        %1151 = vxpose.xlu0.c.b16.cont [3/8] 0, 128
        %1152 = vxpose.xlu0.c.b16.cont [4/8] 0, 128
        %1153 = vxpose.xlu0.c.b16.cont [5/8] 0, 128
        %1154 = vxpose.xlu0.c.b16.cont [6/8] 0, 128
        %1155 = vxpose.xlu0.c.b16.cont [7/8] 0, 128
        %1156 = vxpose.xlu0.c.b16.end [8/8] 0, 128
        %v1157 = vpop.trf.xlu0
        %v1158 = vpop.trf.xlu0
        %v1159 = vpop.trf.xlu0
        %v1160 = vpop.trf.xlu0
        %v1161 = vpop.trf.xlu0
        %v1162 = vpop.trf.xlu0
        %v1163 = vpop.trf.xlu0
        %v1164 = vpop.trf.xlu0
        %1165 = vxpose.xlu0.c.b16.start [1/8] %v1075, 128
        %1166 = vxpose.xlu0.c.b16.cont [2/8] 0, 128
        %1167 = vxpose.xlu0.c.b16.cont [3/8] 0, 128
        %1168 = vxpose.xlu0.c.b16.cont [4/8] 0, 128
        %1169 = vxpose.xlu0.c.b16.cont [5/8] 0, 128
        %1170 = vxpose.xlu0.c.b16.cont [6/8] 0, 128
        %1171 = vxpose.xlu0.c.b16.cont [7/8] 0, 128
        %1172 = vxpose.xlu0.c.b16.end [8/8] 0, 128
        %v1173 = vpop.trf.xlu0
        %v1174 = vpop.trf.xlu0
        %v1175 = vpop.trf.xlu0
        %v1176 = vpop.trf.xlu0
        %v1177 = vpop.trf.xlu0
        %v1178 = vpop.trf.xlu0
        %v1179 = vpop.trf.xlu0
        %v1180 = vpop.trf.xlu0
        %1181 = vxpose.xlu0.c.b16.start [1/8] %v1079, 128
        %1182 = vxpose.xlu0.c.b16.cont [2/8] 0, 128
        %1183 = vxpose.xlu0.c.b16.cont [3/8] 0, 128
        %1184 = vxpose.xlu0.c.b16.cont [4/8] 0, 128
        %1185 = vxpose.xlu0.c.b16.cont [5/8] 0, 128
        %1186 = vxpose.xlu0.c.b16.cont [6/8] 0, 128
        %1187 = vxpose.xlu0.c.b16.cont [7/8] 0, 128
        %1188 = vxpose.xlu0.c.b16.end [8/8] 0, 128
        %v1189 = vpop.trf.xlu0
        %v1190 = vpop.trf.xlu0
        %v1191 = vpop.trf.xlu0
        %v1192 = vpop.trf.xlu0
        %v1193 = vpop.trf.xlu0
        %v1194 = vpop.trf.xlu0
        %v1195 = vpop.trf.xlu0
        %v1196 = vpop.trf.xlu0
        %1197 = vxpose.xlu0.c.b16.start [1/8] %v1083, 128
        %1198 = vxpose.xlu0.c.b16.cont [2/8] 0, 128
        %1199 = vxpose.xlu0.c.b16.cont [3/8] 0, 128
        %1200 = vxpose.xlu0.c.b16.cont [4/8] 0, 128
        %1201 = vxpose.xlu0.c.b16.cont [5/8] 0, 128
        %1202 = vxpose.xlu0.c.b16.cont [6/8] 0, 128
        %1203 = vxpose.xlu0.c.b16.cont [7/8] 0, 128
        %1204 = vxpose.xlu0.c.b16.end [8/8] 0, 128
        %v1205 = vpop.trf.xlu0
        %v1206 = vpop.trf.xlu0
        %v1207 = vpop.trf.xlu0
        %v1208 = vpop.trf.xlu0
        %v1209 = vpop.trf.xlu0
        %v1210 = vpop.trf.xlu0
        %v1211 = vpop.trf.xlu0
        %v1212 = vpop.trf.xlu0
        %v1213 = vcombine.low %v1093, %v1157
        %v1215 = vunpack.c.l.s4 1983009808
        %v1216 = vunpack.c.0.s8 %v1215
        %v1217 = vlaneseq
        %v1218 = vshrl.u32 %v1217, 7
        %v1219 = vsub.s32 %v1216, %v1218
        %v1220 = vrot.slane %v1213, %v1219
        %v1221 = vcombine.low %v1125, %v1189
        %v1223 = vunpack.c.l.s4 1983009808
        %v1224 = vunpack.c.0.s8 %v1223
        %v1225 = vlaneseq
        %v1226 = vshrl.u32 %v1225, 7
        %v1227 = vsub.s32 %v1224, %v1226
        %v1228 = vrot.slane %v1221, %v1227
        %v1229 = vcombine.low %v1220, %v1228
        %v1231 = vunpack.c.l.s4 1934713408
        %v1232 = vunpack.c.0.s8 %v1231
        %v1233 = vlaneseq
        %v1234 = vshrl.u32 %v1233, 7
        %v1235 = vsub.s32 %v1232, %v1234
        %v1236 = vrot.slane %v1229, %v1235
        %v1237 = vcombine.high %v1236, 0
        %v1238 = vcombine.low %v1109, %v1173
        %v1240 = vunpack.c.l.s4 1983009808
        %v1241 = vunpack.c.0.s8 %v1240
        %v1242 = vlaneseq
        %v1243 = vshrl.u32 %v1242, 7
        %v1244 = vsub.s32 %v1241, %v1243
        %v1245 = vrot.slane %v1238, %v1244
        %v1246 = vcombine.low %v1141, %v1205
        %v1248 = vunpack.c.l.s4 1983009808
        %v1249 = vunpack.c.0.s8 %v1248
        %v1250 = vlaneseq
        %v1251 = vshrl.u32 %v1250, 7
        %v1252 = vsub.s32 %v1249, %v1251
        %v1253 = vrot.slane %v1246, %v1252
        %v1254 = vcombine.low %v1245, %v1253
        %v1256 = vunpack.c.l.s4 1934713408
        %v1257 = vunpack.c.0.s8 %v1256
        %v1258 = vlaneseq
        %v1259 = vshrl.u32 %v1258, 7
        %v1260 = vsub.s32 %v1257, %v1259
        %v1261 = vrot.slane %v1254, %v1260
        %v1262 = vcombine.high %v1261, 0
        %v1265 = vpack.i.b16 %v1261, %v1236
        %v1266 = vshrl.u32 %v1236, 16
        %v1267 = vshrl.u32 %v1261, 16
        %v1268 = vpack.i.b16 %v1267, %v1266
        %v1271 = vpack.i.b16 %v1262, %v1237
        %v1272 = vshrl.u32 %v1237, 16
        %v1273 = vshrl.u32 %v1262, 16
        %v1274 = vpack.i.b16 %v1273, %v1272
        %vm1275 = vcmask 64512
        %v1277 = vsel %vm1275, %v847, 0
        %vm1279 = vcmask 1043456
        %v1281 = vsel %vm1279, %v1265, 0
        %1283 = vmatprep.subr.bf16.mxu0 0
        %1284 = vmatpush1.bf16.msra.mxu0 0
        %1285 = vmatprep.subr.bf16.mxu0 0
        %1286 = vmatpush1.bf16.msra.mxu0 0
        %1287 = vmatprep.subr.bf16.mxu0 0
        %1288 = vmatpush1.bf16.msra.mxu0 0
        %1289 = vmatprep.subr.bf16.mxu0 0
        %1290 = vmatpush1.bf16.msra.mxu0 0
        %1291 = vmatprep.subr.bf16.mxu0 0
        %1292 = vmatpush1.bf16.msra.mxu0 0
        %1293 = vmatprep.subr.bf16.mxu0 0
        %1294 = vmatpush1.bf16.msra.mxu0 0
        %1295 = vmatprep.subr.bf16.mxu0 0
        %1296 = vmatpush1.bf16.msra.mxu0 0
        %1297 = vmatprep.subr.bf16.mxu0 0
        %1298 = vmatpush1.bf16.msra.mxu0 %v1281
        %1299 = vmatprep.subr.bf16.mxu0 0
        %1300 = vmatpush2.bf16.msra.mxu0 0
        %1301 = vmatprep.subr.bf16.mxu0 0
        %1302 = vmatpush2.bf16.msra.mxu0 0
        %1303 = vmatprep.subr.bf16.mxu0 0
        %1304 = vmatpush2.bf16.msra.mxu0 0
        %1305 = vmatprep.subr.bf16.mxu0 0
        %1306 = vmatpush2.bf16.msra.mxu0 0
        %1307 = vmatprep.subr.bf16.mxu0 0
        %1308 = vmatpush2.bf16.msra.mxu0 0
        %1309 = vmatprep.subr.bf16.mxu0 0
        %1310 = vmatpush2.bf16.msra.mxu0 0
        %1311 = vmatprep.subr.bf16.mxu0 0
        %1312 = vmatpush2.bf16.msra.mxu0 0
        %1313 = vmatprep.subr.bf16.mxu0 0
        %1314 = vmatpush2.bf16.msra.mxu0 0
        %1315 = vmatprep.mubr.bf16.mxu0 0
        %1316 = vmatmul.mubr.bf16.gmra.mxu0 %v1277
        %v1317 = vpop.f32.mrf.mxu0
        %v1318 = vadd.f32 0.0, %v1317
        %v1319 = vpop.f32.mrf.mxu0
        %v1320 = vpop.f32.mrf.mxu0
        %v1321 = vpop.f32.mrf.mxu0
        %1322 = vdwg.mxu0
        %v1324 = vsel %vm1275, %v850, 0
        %v1327 = vsel %vm1279, %v1268, 0
        %1329 = vmatprep.subr.bf16.mxu0 0
        %1330 = vmatpush1.bf16.msra.mxu0 0
        %1331 = vmatprep.subr.bf16.mxu0 0
        %1332 = vmatpush1.bf16.msra.mxu0 0
        %1333 = vmatprep.subr.bf16.mxu0 0
        %1334 = vmatpush1.bf16.msra.mxu0 0
        %1335 = vmatprep.subr.bf16.mxu0 0
        %1336 = vmatpush1.bf16.msra.mxu0 0
        %1337 = vmatprep.subr.bf16.mxu0 0
        %1338 = vmatpush1.bf16.msra.mxu0 0
        %1339 = vmatprep.subr.bf16.mxu0 0
        %1340 = vmatpush1.bf16.msra.mxu0 0
        %1341 = vmatprep.subr.bf16.mxu0 0
        %1342 = vmatpush1.bf16.msra.mxu0 0
        %1343 = vmatprep.subr.bf16.mxu0 0
        %1344 = vmatpush1.bf16.msra.mxu0 %v1327
        %1345 = vmatprep.subr.bf16.mxu0 0
        %1346 = vmatpush2.bf16.msra.mxu0 0
        %1347 = vmatprep.subr.bf16.mxu0 0
        %1348 = vmatpush2.bf16.msra.mxu0 0
        %1349 = vmatprep.subr.bf16.mxu0 0
        %1350 = vmatpush2.bf16.msra.mxu0 0
        %1351 = vmatprep.subr.bf16.mxu0 0
        %1352 = vmatpush2.bf16.msra.mxu0 0
        %1353 = vmatprep.subr.bf16.mxu0 0
        %1354 = vmatpush2.bf16.msra.mxu0 0
        %1355 = vmatprep.subr.bf16.mxu0 0
        %1356 = vmatpush2.bf16.msra.mxu0 0
        %1357 = vmatprep.subr.bf16.mxu0 0
        %1358 = vmatpush2.bf16.msra.mxu0 0
        %1359 = vmatprep.subr.bf16.mxu0 0
        %1360 = vmatpush2.bf16.msra.mxu0 0
        %1361 = vmatprep.mubr.bf16.mxu0 0
        %1362 = vmatmul.mubr.bf16.gmra.mxu0 %v1324
        %v1363 = vpop.f32.mrf.mxu0
        %v1364 = vadd.f32 0.0, %v1363
        %v1365 = vpop.f32.mrf.mxu0
        %v1366 = vpop.f32.mrf.mxu0
        %v1367 = vpop.f32.mrf.mxu0
        %1368 = vdwg.mxu0
        %v1370 = vsel %vm1275, %v853, 0
        %v1373 = vsel %vm1279, %v1271, 0
        %1375 = vmatprep.subr.bf16.mxu0 0
        %1376 = vmatpush1.bf16.msra.mxu0 0
        %1377 = vmatprep.subr.bf16.mxu0 0
        %1378 = vmatpush1.bf16.msra.mxu0 0
        %1379 = vmatprep.subr.bf16.mxu0 0
        %1380 = vmatpush1.bf16.msra.mxu0 0
        %1381 = vmatprep.subr.bf16.mxu0 0
        %1382 = vmatpush1.bf16.msra.mxu0 0
        %1383 = vmatprep.subr.bf16.mxu0 0
        %1384 = vmatpush1.bf16.msra.mxu0 0
        %1385 = vmatprep.subr.bf16.mxu0 0
        %1386 = vmatpush1.bf16.msra.mxu0 0
        %1387 = vmatprep.subr.bf16.mxu0 0
        %1388 = vmatpush1.bf16.msra.mxu0 0
        %1389 = vmatprep.subr.bf16.mxu0 0
        %1390 = vmatpush1.bf16.msra.mxu0 %v1373
        %1391 = vmatprep.subr.bf16.mxu0 0
        %1392 = vmatpush2.bf16.msra.mxu0 0
        %1393 = vmatprep.subr.bf16.mxu0 0
        %1394 = vmatpush2.bf16.msra.mxu0 0
        %1395 = vmatprep.subr.bf16.mxu0 0
        %1396 = vmatpush2.bf16.msra.mxu0 0
        %1397 = vmatprep.subr.bf16.mxu0 0
        %1398 = vmatpush2.bf16.msra.mxu0 0
        %1399 = vmatprep.subr.bf16.mxu0 0
        %1400 = vmatpush2.bf16.msra.mxu0 0
        %1401 = vmatprep.subr.bf16.mxu0 0
        %1402 = vmatpush2.bf16.msra.mxu0 0
        %1403 = vmatprep.subr.bf16.mxu0 0
        %1404 = vmatpush2.bf16.msra.mxu0 0
        %1405 = vmatprep.subr.bf16.mxu0 0
        %1406 = vmatpush2.bf16.msra.mxu0 0
        %1407 = vmatprep.mubr.bf16.mxu0 0
        %1408 = vmatmul.mubr.bf16.gmra.mxu0 %v1370
        %v1409 = vpop.f32.mrf.mxu0
        %v1410 = vadd.f32 0.0, %v1409
        %v1411 = vpop.f32.mrf.mxu0
        %v1412 = vpop.f32.mrf.mxu0
        %v1413 = vpop.f32.mrf.mxu0
        %1414 = vdwg.mxu0
        %v1416 = vsel %vm1275, %v856, 0
        %v1419 = vsel %vm1279, %v1274, 0
        %1421 = vmatprep.subr.bf16.mxu0 0
        %1422 = vmatpush1.bf16.msra.mxu0 0
        %1423 = vmatprep.subr.bf16.mxu0 0
        %1424 = vmatpush1.bf16.msra.mxu0 0
        %1425 = vmatprep.subr.bf16.mxu0 0
        %1426 = vmatpush1.bf16.msra.mxu0 0
        %1427 = vmatprep.subr.bf16.mxu0 0
        %1428 = vmatpush1.bf16.msra.mxu0 0
        %1429 = vmatprep.subr.bf16.mxu0 0
        %1430 = vmatpush1.bf16.msra.mxu0 0
        %1431 = vmatprep.subr.bf16.mxu0 0
        %1432 = vmatpush1.bf16.msra.mxu0 0
        %1433 = vmatprep.subr.bf16.mxu0 0
        %1434 = vmatpush1.bf16.msra.mxu0 0
        %1435 = vmatprep.subr.bf16.mxu0 0
        %1436 = vmatpush1.bf16.msra.mxu0 %v1419
        %1437 = vmatprep.subr.bf16.mxu0 0
        %1438 = vmatpush2.bf16.msra.mxu0 0
        %1439 = vmatprep.subr.bf16.mxu0 0
        %1440 = vmatpush2.bf16.msra.mxu0 0
        %1441 = vmatprep.subr.bf16.mxu0 0
        %1442 = vmatpush2.bf16.msra.mxu0 0
        %1443 = vmatprep.subr.bf16.mxu0 0
        %1444 = vmatpush2.bf16.msra.mxu0 0
        %1445 = vmatprep.subr.bf16.mxu0 0
        %1446 = vmatpush2.bf16.msra.mxu0 0
        %1447 = vmatprep.subr.bf16.mxu0 0
        %1448 = vmatpush2.bf16.msra.mxu0 0
        %1449 = vmatprep.subr.bf16.mxu0 0
        %1450 = vmatpush2.bf16.msra.mxu0 0
        %1451 = vmatprep.subr.bf16.mxu0 0
        %1452 = vmatpush2.bf16.msra.mxu0 0
        %1453 = vmatprep.mubr.bf16.mxu0 0
        %1454 = vmatmul.mubr.bf16.gmra.mxu0 %v1416
        %v1455 = vpop.f32.mrf.mxu0
        %v1456 = vadd.f32 0.0, %v1455
        %v1457 = vpop.f32.mrf.mxu0
        %v1458 = vpop.f32.mrf.mxu0
        %v1459 = vpop.f32.mrf.mxu0
        %1460 = vdwg.mxu0
        %v1461 = vmul.f32 %v1318, 0.35355338
        %v1462 = vmul.f32 %v1364, 0.35355338
        %v1463 = vmul.f32 %v1410, 0.35355338
        %v1464 = vmul.f32 %v1456, 0.35355338
        %v1465 = vsel %vm778, 1, 0
        %vm1466 = vcmp.eq.s32.totalorder %v1465, 1
        %v1467 = vsel %vm1466, %v1461, 0.0
        %v1468 = vsel %vm1466, %v1462, 0.0
        %v1469 = vsel %vm1466, %v1463, 0.0
        %v1470 = vsel %vm1466, %v1464, 0.0
        %v1471 = vsel %vm1275, %v1467, -inf
        %1472 = vmax.xlane.f32.xlu0 %v1471
        %v1473 = vpop.xlane.xlu0 %1472
        %v1474 = vsel %vm1275, %v1468, -inf
        %1475 = vmax.xlane.f32.xlu0 %v1474
        %v1476 = vpop.xlane.xlu0 %1475
        %v1477 = vsel %vm1275, %v1469, -inf
        %1478 = vmax.xlane.f32.xlu0 %v1477
        %v1479 = vpop.xlane.xlu0 %1478
        %v1480 = vsel %vm1275, %v1470, -inf
        %1481 = vmax.xlane.f32.xlu0 %v1480
        %v1482 = vpop.xlane.xlu0 %1481
        %v1483 = vsub.f32 %v1467, %v1473
        %v1484 = vsub.f32 %v1468, %v1476
        %v1485 = vsub.f32 %v1469, %v1479
        %v1486 = vsub.f32 %v1470, %v1482
        %v1487 = vmul.f32 %v1483, 1.442695
        %v1488 = vpow.pop %v1487
        %v1489 = vmul.f32 %v1484, 1.442695
        %v1490 = vpow.pop %v1489
        %v1491 = vmul.f32 %v1485, 1.442695
        %v1492 = vpow.pop %v1491
        %v1493 = vmul.f32 %v1486, 1.442695
        %v1494 = vpow.pop %v1493
        %v1495 = vsel %vm1275, %v1488, 0.0
        %1496 = vadd.xlane.f32.xlu0 %v1495
        %v1497 = vpop.xlane.xlu0 %1496
        %v1498 = vsel %vm1275, %v1490, 0.0
        %1499 = vadd.xlane.f32.xlu0 %v1498
        %v1500 = vpop.xlane.xlu0 %1499
        %v1501 = vsel %vm1275, %v1492, 0.0
        %1502 = vadd.xlane.f32.xlu0 %v1501
        %v1503 = vpop.xlane.xlu0 %1502
        %v1504 = vsel %vm1275, %v1494, 0.0
        %1505 = vadd.xlane.f32.xlu0 %v1504
        %v1506 = vpop.xlane.xlu0 %1505
        %v1507 = vrcp.pop %v1497
        %v1508 = vrcp.pop %v1500
        %v1509 = vrcp.pop %v1503
        %v1510 = vrcp.pop %v1506
        %v1511 = vmul.f32 %v1488, %v1507
        %v1512 = vmul.f32 %v1490, %v1508
        %v1513 = vmul.f32 %v1492, %v1509
        %v1514 = vmul.f32 %v1494, %v1510
        %v1515 = vpack.c.bf16 %v1511, %v1511
        %v1516 = vpack.c.bf16 %v1512, %v1512
        %v1517 = vpack.c.bf16 %v1513, %v1513
        %v1518 = vpack.c.bf16 %v1514, %v1514
        %v1519 = vpack.c.bf16 %v746, %v746
        %v1520 = vpack.c.bf16 %v770, %v770
        %v1521 = vpack.c.bf16 %v753, %v753
        %v1522 = vpack.c.bf16 %v771, %v771
        %v1523 = vpack.c.bf16 %v762, %v762
        %v1524 = vpack.c.bf16 %v772, %v772
        %v1525 = vpack.c.bf16 %v769, %v769
        %v1526 = vpack.c.bf16 %v773, %v773
        %1527 = vxpose.xlu0.c.b16.start [1/8] %v1519, 128
        %1528 = vxpose.xlu0.c.b16.cont [2/8] 0, 128
        %1529 = vxpose.xlu0.c.b16.cont [3/8] 0, 128
        %1530 = vxpose.xlu0.c.b16.cont [4/8] 0, 128
        %1531 = vxpose.xlu0.c.b16.cont [5/8] 0, 128
        %1532 = vxpose.xlu0.c.b16.cont [6/8] 0, 128
        %1533 = vxpose.xlu0.c.b16.cont [7/8] 0, 128
        %1534 = vxpose.xlu0.c.b16.end [8/8] 0, 128
        %v1535 = vpop.trf.xlu0
        %v1536 = vpop.trf.xlu0
        %v1537 = vpop.trf.xlu0
        %v1538 = vpop.trf.xlu0
        %v1539 = vpop.trf.xlu0
        %v1540 = vpop.trf.xlu0
        %v1541 = vpop.trf.xlu0
        %v1542 = vpop.trf.xlu0
        %1543 = vxpose.xlu0.c.b16.start [1/8] %v1520, 128
        %1544 = vxpose.xlu0.c.b16.cont [2/8] 0, 128
        %1545 = vxpose.xlu0.c.b16.cont [3/8] 0, 128
        %1546 = vxpose.xlu0.c.b16.cont [4/8] 0, 128
        %1547 = vxpose.xlu0.c.b16.cont [5/8] 0, 128
        %1548 = vxpose.xlu0.c.b16.cont [6/8] 0, 128
        %1549 = vxpose.xlu0.c.b16.cont [7/8] 0, 128
        %1550 = vxpose.xlu0.c.b16.end [8/8] 0, 128
        %v1551 = vpop.trf.xlu0
        %v1552 = vpop.trf.xlu0
        %v1553 = vpop.trf.xlu0
        %v1554 = vpop.trf.xlu0
        %v1555 = vpop.trf.xlu0
        %v1556 = vpop.trf.xlu0
        %v1557 = vpop.trf.xlu0
        %v1558 = vpop.trf.xlu0
        %1559 = vxpose.xlu0.c.b16.start [1/8] %v1521, 128
        %1560 = vxpose.xlu0.c.b16.cont [2/8] 0, 128
        %1561 = vxpose.xlu0.c.b16.cont [3/8] 0, 128
        %1562 = vxpose.xlu0.c.b16.cont [4/8] 0, 128
        %1563 = vxpose.xlu0.c.b16.cont [5/8] 0, 128
        %1564 = vxpose.xlu0.c.b16.cont [6/8] 0, 128
        %1565 = vxpose.xlu0.c.b16.cont [7/8] 0, 128
        %1566 = vxpose.xlu0.c.b16.end [8/8] 0, 128
        %v1567 = vpop.trf.xlu0
        %v1568 = vpop.trf.xlu0
        %v1569 = vpop.trf.xlu0
        %v1570 = vpop.trf.xlu0
        %v1571 = vpop.trf.xlu0
        %v1572 = vpop.trf.xlu0
        %v1573 = vpop.trf.xlu0
        %v1574 = vpop.trf.xlu0
        %1575 = vxpose.xlu0.c.b16.start [1/8] %v1522, 128
        %1576 = vxpose.xlu0.c.b16.cont [2/8] 0, 128
        %1577 = vxpose.xlu0.c.b16.cont [3/8] 0, 128
        %1578 = vxpose.xlu0.c.b16.cont [4/8] 0, 128
        %1579 = vxpose.xlu0.c.b16.cont [5/8] 0, 128
        %1580 = vxpose.xlu0.c.b16.cont [6/8] 0, 128
        %1581 = vxpose.xlu0.c.b16.cont [7/8] 0, 128
        %1582 = vxpose.xlu0.c.b16.end [8/8] 0, 128
        %v1583 = vpop.trf.xlu0
        %v1584 = vpop.trf.xlu0
        %v1585 = vpop.trf.xlu0
        %v1586 = vpop.trf.xlu0
        %v1587 = vpop.trf.xlu0
        %v1588 = vpop.trf.xlu0
        %v1589 = vpop.trf.xlu0
        %v1590 = vpop.trf.xlu0
        %1591 = vxpose.xlu0.c.b16.start [1/8] %v1523, 128
        %1592 = vxpose.xlu0.c.b16.cont [2/8] 0, 128
        %1593 = vxpose.xlu0.c.b16.cont [3/8] 0, 128
        %1594 = vxpose.xlu0.c.b16.cont [4/8] 0, 128
        %1595 = vxpose.xlu0.c.b16.cont [5/8] 0, 128
        %1596 = vxpose.xlu0.c.b16.cont [6/8] 0, 128
        %1597 = vxpose.xlu0.c.b16.cont [7/8] 0, 128
        %1598 = vxpose.xlu0.c.b16.end [8/8] 0, 128
        %v1599 = vpop.trf.xlu0
        %v1600 = vpop.trf.xlu0
        %v1601 = vpop.trf.xlu0
        %v1602 = vpop.trf.xlu0
        %v1603 = vpop.trf.xlu0
        %v1604 = vpop.trf.xlu0
        %v1605 = vpop.trf.xlu0
        %v1606 = vpop.trf.xlu0
        %1607 = vxpose.xlu0.c.b16.start [1/8] %v1524, 128
        %1608 = vxpose.xlu0.c.b16.cont [2/8] 0, 128
        %1609 = vxpose.xlu0.c.b16.cont [3/8] 0, 128
        %1610 = vxpose.xlu0.c.b16.cont [4/8] 0, 128
        %1611 = vxpose.xlu0.c.b16.cont [5/8] 0, 128
        %1612 = vxpose.xlu0.c.b16.cont [6/8] 0, 128
        %1613 = vxpose.xlu0.c.b16.cont [7/8] 0, 128
        %1614 = vxpose.xlu0.c.b16.end [8/8] 0, 128
        %v1615 = vpop.trf.xlu0
        %v1616 = vpop.trf.xlu0
        %v1617 = vpop.trf.xlu0
        %v1618 = vpop.trf.xlu0
        %v1619 = vpop.trf.xlu0
        %v1620 = vpop.trf.xlu0
        %v1621 = vpop.trf.xlu0
        %v1622 = vpop.trf.xlu0
        %1623 = vxpose.xlu0.c.b16.start [1/8] %v1525, 128
        %1624 = vxpose.xlu0.c.b16.cont [2/8] 0, 128
        %1625 = vxpose.xlu0.c.b16.cont [3/8] 0, 128
        %1626 = vxpose.xlu0.c.b16.cont [4/8] 0, 128
        %1627 = vxpose.xlu0.c.b16.cont [5/8] 0, 128
        %1628 = vxpose.xlu0.c.b16.cont [6/8] 0, 128
        %1629 = vxpose.xlu0.c.b16.cont [7/8] 0, 128
        %1630 = vxpose.xlu0.c.b16.end [8/8] 0, 128
        %v1631 = vpop.trf.xlu0
        %v1632 = vpop.trf.xlu0
        %v1633 = vpop.trf.xlu0
        %v1634 = vpop.trf.xlu0
        %v1635 = vpop.trf.xlu0
        %v1636 = vpop.trf.xlu0
        %v1637 = vpop.trf.xlu0
        %v1638 = vpop.trf.xlu0
        %1639 = vxpose.xlu0.c.b16.start [1/8] %v1526, 128
        %1640 = vxpose.xlu0.c.b16.cont [2/8] 0, 128
        %1641 = vxpose.xlu0.c.b16.cont [3/8] 0, 128
        %1642 = vxpose.xlu0.c.b16.cont [4/8] 0, 128
        %1643 = vxpose.xlu0.c.b16.cont [5/8] 0, 128
        %1644 = vxpose.xlu0.c.b16.cont [6/8] 0, 128
        %1645 = vxpose.xlu0.c.b16.cont [7/8] 0, 128
        %1646 = vxpose.xlu0.c.b16.end [8/8] 0, 128
        %v1647 = vpop.trf.xlu0
        %v1648 = vpop.trf.xlu0
        %v1649 = vpop.trf.xlu0
        %v1650 = vpop.trf.xlu0
        %v1651 = vpop.trf.xlu0
        %v1652 = vpop.trf.xlu0
        %v1653 = vpop.trf.xlu0
        %v1654 = vpop.trf.xlu0
        %v1655 = vcombine.low %v1535, %v1599
        %v1657 = vunpack.c.l.s4 1983009808
        %v1658 = vunpack.c.0.s8 %v1657
        %v1659 = vlaneseq
        %v1660 = vshrl.u32 %v1659, 7
        %v1661 = vsub.s32 %v1658, %v1660
        %v1662 = vrot.slane %v1655, %v1661
        %v1663 = vcombine.low %v1567, %v1631
        %v1665 = vunpack.c.l.s4 1983009808
        %v1666 = vunpack.c.0.s8 %v1665
        %v1667 = vlaneseq
        %v1668 = vshrl.u32 %v1667, 7
        %v1669 = vsub.s32 %v1666, %v1668
        %v1670 = vrot.slane %v1663, %v1669
        %v1671 = vcombine.low %v1662, %v1670
        %v1672 = vcombine.high %v1662, %v1670
        %v1674 = vunpack.c.l.s4 1934713408
        %v1675 = vunpack.c.0.s8 %v1674
        %v1676 = vlaneseq
        %v1677 = vshrl.u32 %v1676, 7
        %v1678 = vsub.s32 %v1675, %v1677
        %v1679 = vrot.slane %v1671, %v1678
        %v1681 = vunpack.c.l.s4 1934713408
        %v1682 = vunpack.c.0.s8 %v1681
        %v1683 = vlaneseq
        %v1684 = vshrl.u32 %v1683, 7
        %v1685 = vsub.s32 %v1682, %v1684
        %v1686 = vrot.slane %v1672, %v1685
        %v1687 = vcombine.high %v1679, 0
        %v1688 = vcombine.high %v1686, 0
        %v1689 = vcombine.low %v1551, %v1615
        %v1691 = vunpack.c.l.s4 1983009808
        %v1692 = vunpack.c.0.s8 %v1691
        %v1693 = vlaneseq
        %v1694 = vshrl.u32 %v1693, 7
        %v1695 = vsub.s32 %v1692, %v1694
        %v1696 = vrot.slane %v1689, %v1695
        %v1697 = vcombine.low %v1583, %v1647
        %v1699 = vunpack.c.l.s4 1983009808
        %v1700 = vunpack.c.0.s8 %v1699
        %v1701 = vlaneseq
        %v1702 = vshrl.u32 %v1701, 7
        %v1703 = vsub.s32 %v1700, %v1702
        %v1704 = vrot.slane %v1697, %v1703
        %v1705 = vcombine.low %v1696, %v1704
        %v1706 = vcombine.high %v1696, %v1704
        %v1708 = vunpack.c.l.s4 1934713408
        %v1709 = vunpack.c.0.s8 %v1708
        %v1710 = vlaneseq
        %v1711 = vshrl.u32 %v1710, 7
        %v1712 = vsub.s32 %v1709, %v1711
        %v1713 = vrot.slane %v1705, %v1712
        %v1715 = vunpack.c.l.s4 1934713408
        %v1716 = vunpack.c.0.s8 %v1715
        %v1717 = vlaneseq
        %v1718 = vshrl.u32 %v1717, 7
        %v1719 = vsub.s32 %v1716, %v1718
        %v1720 = vrot.slane %v1706, %v1719
        %v1721 = vcombine.high %v1713, 0
        %v1722 = vcombine.high %v1720, 0
        %v1725 = vpack.i.b16 %v1713, %v1679
        %v1727 = vshrl.u32 %v1679, 16
        %v1728 = vshrl.u32 %v1713, 16
        %v1729 = vpack.i.b16 %v1728, %v1727
        %v1733 = vpack.i.b16 %v1721, %v1687
        %v1735 = vshrl.u32 %v1687, 16
        %v1736 = vshrl.u32 %v1721, 16
        %v1737 = vpack.i.b16 %v1736, %v1735
        %v1741 = vpack.i.b16 %v1720, %v1686
        %v1743 = vshrl.u32 %v1686, 16
        %v1744 = vshrl.u32 %v1720, 16
        %v1745 = vpack.i.b16 %v1744, %v1743
        %v1749 = vpack.i.b16 %v1722, %v1688
        %v1751 = vshrl.u32 %v1688, 16
        %v1752 = vshrl.u32 %v1722, 16
        %v1753 = vpack.i.b16 %v1752, %v1751
        %1755 = vxpose.xlu0.c.b16.start [1/8] %v1725, 128
        %1756 = vxpose.xlu0.c.b16.cont [2/8] 0, 128
        %1757 = vxpose.xlu0.c.b16.cont [3/8] 0, 128
        %1758 = vxpose.xlu0.c.b16.cont [4/8] 0, 128
        %1759 = vxpose.xlu0.c.b16.cont [5/8] 0, 128
        %1760 = vxpose.xlu0.c.b16.cont [6/8] 0, 128
        %1761 = vxpose.xlu0.c.b16.cont [7/8] 0, 128
        %1762 = vxpose.xlu0.c.b16.end [8/8] 0, 128
        %v1763 = vpop.trf.xlu0
        %v1764 = vpop.trf.xlu0
        %v1765 = vpop.trf.xlu0
        %v1766 = vpop.trf.xlu0
        %v1767 = vpop.trf.xlu0
        %v1768 = vpop.trf.xlu0
        %v1769 = vpop.trf.xlu0
        %v1770 = vpop.trf.xlu0
        %1771 = vxpose.xlu0.c.b16.start [1/8] %v1729, 128
        %1772 = vxpose.xlu0.c.b16.cont [2/8] 0, 128
        %1773 = vxpose.xlu0.c.b16.cont [3/8] 0, 128
        %1774 = vxpose.xlu0.c.b16.cont [4/8] 0, 128
        %1775 = vxpose.xlu0.c.b16.cont [5/8] 0, 128
        %1776 = vxpose.xlu0.c.b16.cont [6/8] 0, 128
        %1777 = vxpose.xlu0.c.b16.cont [7/8] 0, 128
        %1778 = vxpose.xlu0.c.b16.end [8/8] 0, 128
        %v1779 = vpop.trf.xlu0
        %v1780 = vpop.trf.xlu0
        %v1781 = vpop.trf.xlu0
        %v1782 = vpop.trf.xlu0
        %v1783 = vpop.trf.xlu0
        %v1784 = vpop.trf.xlu0
        %v1785 = vpop.trf.xlu0
        %v1786 = vpop.trf.xlu0
        %1787 = vxpose.xlu0.c.b16.start [1/8] %v1733, 128
        %1788 = vxpose.xlu0.c.b16.cont [2/8] 0, 128
        %1789 = vxpose.xlu0.c.b16.cont [3/8] 0, 128
        %1790 = vxpose.xlu0.c.b16.cont [4/8] 0, 128
        %1791 = vxpose.xlu0.c.b16.cont [5/8] 0, 128
        %1792 = vxpose.xlu0.c.b16.cont [6/8] 0, 128
        %1793 = vxpose.xlu0.c.b16.cont [7/8] 0, 128
        %1794 = vxpose.xlu0.c.b16.end [8/8] 0, 128
        %v1795 = vpop.trf.xlu0
        %v1796 = vpop.trf.xlu0
        %v1797 = vpop.trf.xlu0
        %v1798 = vpop.trf.xlu0
        %v1799 = vpop.trf.xlu0
        %v1800 = vpop.trf.xlu0
        %v1801 = vpop.trf.xlu0
        %v1802 = vpop.trf.xlu0
        %1803 = vxpose.xlu0.c.b16.start [1/8] %v1737, 128
        %1804 = vxpose.xlu0.c.b16.cont [2/8] 0, 128
        %1805 = vxpose.xlu0.c.b16.cont [3/8] 0, 128
        %1806 = vxpose.xlu0.c.b16.cont [4/8] 0, 128
        %1807 = vxpose.xlu0.c.b16.cont [5/8] 0, 128
        %1808 = vxpose.xlu0.c.b16.cont [6/8] 0, 128
        %1809 = vxpose.xlu0.c.b16.cont [7/8] 0, 128
        %1810 = vxpose.xlu0.c.b16.end [8/8] 0, 128
        %v1811 = vpop.trf.xlu0
        %v1812 = vpop.trf.xlu0
        %v1813 = vpop.trf.xlu0
        %v1814 = vpop.trf.xlu0
        %v1815 = vpop.trf.xlu0
        %v1816 = vpop.trf.xlu0
        %v1817 = vpop.trf.xlu0
        %v1818 = vpop.trf.xlu0
        %1819 = vxpose.xlu0.c.b16.start [1/8] %v1741, 128
        %1820 = vxpose.xlu0.c.b16.cont [2/8] 0, 128
        %1821 = vxpose.xlu0.c.b16.cont [3/8] 0, 128
        %1822 = vxpose.xlu0.c.b16.cont [4/8] 0, 128
        %1823 = vxpose.xlu0.c.b16.cont [5/8] 0, 128
        %1824 = vxpose.xlu0.c.b16.cont [6/8] 0, 128
        %1825 = vxpose.xlu0.c.b16.cont [7/8] 0, 128
        %1826 = vxpose.xlu0.c.b16.end [8/8] 0, 128
        %v1827 = vpop.trf.xlu0
        %v1828 = vpop.trf.xlu0
        %v1829 = vpop.trf.xlu0
        %v1830 = vpop.trf.xlu0
        %v1831 = vpop.trf.xlu0
        %v1832 = vpop.trf.xlu0
        %v1833 = vpop.trf.xlu0
        %v1834 = vpop.trf.xlu0
        %1835 = vxpose.xlu0.c.b16.start [1/8] %v1745, 128
        %1836 = vxpose.xlu0.c.b16.cont [2/8] 0, 128
        %1837 = vxpose.xlu0.c.b16.cont [3/8] 0, 128
        %1838 = vxpose.xlu0.c.b16.cont [4/8] 0, 128
        %1839 = vxpose.xlu0.c.b16.cont [5/8] 0, 128
        %1840 = vxpose.xlu0.c.b16.cont [6/8] 0, 128
        %1841 = vxpose.xlu0.c.b16.cont [7/8] 0, 128
        %1842 = vxpose.xlu0.c.b16.end [8/8] 0, 128
        %v1843 = vpop.trf.xlu0
        %v1844 = vpop.trf.xlu0
        %v1845 = vpop.trf.xlu0
        %v1846 = vpop.trf.xlu0
        %v1847 = vpop.trf.xlu0
        %v1848 = vpop.trf.xlu0
        %v1849 = vpop.trf.xlu0
        %v1850 = vpop.trf.xlu0
        %1851 = vxpose.xlu0.c.b16.start [1/8] %v1749, 128
        %1852 = vxpose.xlu0.c.b16.cont [2/8] 0, 128
        %1853 = vxpose.xlu0.c.b16.cont [3/8] 0, 128
        %1854 = vxpose.xlu0.c.b16.cont [4/8] 0, 128
        %1855 = vxpose.xlu0.c.b16.cont [5/8] 0, 128
        %1856 = vxpose.xlu0.c.b16.cont [6/8] 0, 128
        %1857 = vxpose.xlu0.c.b16.cont [7/8] 0, 128
        %1858 = vxpose.xlu0.c.b16.end [8/8] 0, 128
        %v1859 = vpop.trf.xlu0
        %v1860 = vpop.trf.xlu0
        %v1861 = vpop.trf.xlu0
        %v1862 = vpop.trf.xlu0
        %v1863 = vpop.trf.xlu0
        %v1864 = vpop.trf.xlu0
        %v1865 = vpop.trf.xlu0
        %v1866 = vpop.trf.xlu0
        %1867 = vxpose.xlu0.c.b16.start [1/8] %v1753, 128
        %1868 = vxpose.xlu0.c.b16.cont [2/8] 0, 128
        %1869 = vxpose.xlu0.c.b16.cont [3/8] 0, 128
        %1870 = vxpose.xlu0.c.b16.cont [4/8] 0, 128
        %1871 = vxpose.xlu0.c.b16.cont [5/8] 0, 128
        %1872 = vxpose.xlu0.c.b16.cont [6/8] 0, 128
        %1873 = vxpose.xlu0.c.b16.cont [7/8] 0, 128
        %1874 = vxpose.xlu0.c.b16.end [8/8] 0, 128
        %v1875 = vpop.trf.xlu0
        %v1876 = vpop.trf.xlu0
        %v1877 = vpop.trf.xlu0
        %v1878 = vpop.trf.xlu0
        %v1879 = vpop.trf.xlu0
        %v1880 = vpop.trf.xlu0
        %v1881 = vpop.trf.xlu0
        %v1882 = vpop.trf.xlu0
        %v1883 = vcombine.low %v1763, %v1827
        %v1885 = vunpack.c.l.s4 1983009808
        %v1886 = vunpack.c.0.s8 %v1885
        %v1887 = vlaneseq
        %v1888 = vshrl.u32 %v1887, 7
        %v1889 = vsub.s32 %v1886, %v1888
        %v1890 = vrot.slane %v1883, %v1889
        %v1891 = vcombine.low %v1795, %v1859
        %v1893 = vunpack.c.l.s4 1983009808
        %v1894 = vunpack.c.0.s8 %v1893
        %v1895 = vlaneseq
        %v1896 = vshrl.u32 %v1895, 7
        %v1897 = vsub.s32 %v1894, %v1896
        %v1898 = vrot.slane %v1891, %v1897
        %v1899 = vcombine.low %v1890, %v1898
        %v1901 = vunpack.c.l.s4 1934713408
        %v1902 = vunpack.c.0.s8 %v1901
        %v1903 = vlaneseq
        %v1904 = vshrl.u32 %v1903, 7
        %v1905 = vsub.s32 %v1902, %v1904
        %v1906 = vrot.slane %v1899, %v1905
        %v1907 = vcombine.high %v1906, 0
        %v1908 = vcombine.low %v1779, %v1843
        %v1910 = vunpack.c.l.s4 1983009808
        %v1911 = vunpack.c.0.s8 %v1910
        %v1912 = vlaneseq
        %v1913 = vshrl.u32 %v1912, 7
        %v1914 = vsub.s32 %v1911, %v1913
        %v1915 = vrot.slane %v1908, %v1914
        %v1916 = vcombine.low %v1811, %v1875
        %v1918 = vunpack.c.l.s4 1983009808
        %v1919 = vunpack.c.0.s8 %v1918
        %v1920 = vlaneseq
        %v1921 = vshrl.u32 %v1920, 7
        %v1922 = vsub.s32 %v1919, %v1921
        %v1923 = vrot.slane %v1916, %v1922
        %v1924 = vcombine.low %v1915, %v1923
        %v1926 = vunpack.c.l.s4 1934713408
        %v1927 = vunpack.c.0.s8 %v1926
        %v1928 = vlaneseq
        %v1929 = vshrl.u32 %v1928, 7
        %v1930 = vsub.s32 %v1927, %v1929
        %v1931 = vrot.slane %v1924, %v1930
        %v1932 = vcombine.high %v1931, 0
        %v1935 = vpack.i.b16 %v1931, %v1906
        %v1936 = vshrl.u32 %v1906, 16
        %v1937 = vshrl.u32 %v1931, 16
        %v1938 = vpack.i.b16 %v1937, %v1936
        %v1941 = vpack.i.b16 %v1932, %v1907
        %v1942 = vshrl.u32 %v1907, 16
        %v1943 = vshrl.u32 %v1932, 16
        %v1944 = vpack.i.b16 %v1943, %v1942
        %v1946 = vsel %vm1275, %v1935, 0
        %v1949 = vsel %vm1275, %v1515, 0
        %1951 = vmatprep.subr.bf16.mxu0 0
        %1952 = vmatpush1.bf16.xpose.msra.mxu0 0
        %1953 = vmatprep.subr.bf16.mxu0 0
        %1954 = vmatpush1.bf16.xpose.msra.mxu0 0
        %1955 = vmatprep.subr.bf16.mxu0 0
        %1956 = vmatpush1.bf16.xpose.msra.mxu0 0
        %1957 = vmatprep.subr.bf16.mxu0 0
        %1958 = vmatpush1.bf16.xpose.msra.mxu0 0
        %1959 = vmatprep.subr.bf16.mxu0 0
        %1960 = vmatpush1.bf16.xpose.msra.mxu0 0
        %1961 = vmatprep.subr.bf16.mxu0 0
        %1962 = vmatpush1.bf16.xpose.msra.mxu0 0
        %1963 = vmatprep.subr.bf16.mxu0 0
        %1964 = vmatpush1.bf16.xpose.msra.mxu0 0
        %1965 = vmatprep.subr.bf16.mxu0 0
        %1966 = vmatpush1.bf16.xpose.msra.mxu0 %v1949
        %1967 = vmatprep.subr.bf16.mxu0 0
        %1968 = vmatpush2.bf16.xpose.msra.mxu0 0
        %1969 = vmatprep.subr.bf16.mxu0 0
        %1970 = vmatpush2.bf16.xpose.msra.mxu0 0
        %1971 = vmatprep.subr.bf16.mxu0 0
        %1972 = vmatpush2.bf16.xpose.msra.mxu0 0
        %1973 = vmatprep.subr.bf16.mxu0 0
        %1974 = vmatpush2.bf16.xpose.msra.mxu0 0
        %1975 = vmatprep.subr.bf16.mxu0 0
        %1976 = vmatpush2.bf16.xpose.msra.mxu0 0
        %1977 = vmatprep.subr.bf16.mxu0 0
        %1978 = vmatpush2.bf16.xpose.msra.mxu0 0
        %1979 = vmatprep.subr.bf16.mxu0 0
        %1980 = vmatpush2.bf16.xpose.msra.mxu0 0
        %1981 = vmatprep.subr.bf16.mxu0 0
        %1982 = vmatpush2.bf16.xpose.msra.mxu0 0
        %1983 = vmatprep.mubr.bf16.mxu0 0
        %1984 = vmatmul.mubr.bf16.gmra.mxu0 %v1946
        %v1985 = vpop.f32.mrf.mxu0
        %v1986 = vadd.f32 0.0, %v1985
        %v1987 = vpop.f32.mrf.mxu0
        %v1988 = vpop.f32.mrf.mxu0
        %v1989 = vpop.f32.mrf.mxu0
        %1990 = vdwg.mxu0
        %v1992 = vsel %vm1275, %v1938, 0
        %v1995 = vsel %vm1275, %v1516, 0
        %1997 = vmatprep.subr.bf16.mxu0 0
        %1998 = vmatpush1.bf16.xpose.msra.mxu0 0
        %1999 = vmatprep.subr.bf16.mxu0 0
        %2000 = vmatpush1.bf16.xpose.msra.mxu0 0
        %2001 = vmatprep.subr.bf16.mxu0 0
        %2002 = vmatpush1.bf16.xpose.msra.mxu0 0
        %2003 = vmatprep.subr.bf16.mxu0 0
        %2004 = vmatpush1.bf16.xpose.msra.mxu0 0
        %2005 = vmatprep.subr.bf16.mxu0 0
        %2006 = vmatpush1.bf16.xpose.msra.mxu0 0
        %2007 = vmatprep.subr.bf16.mxu0 0
        %2008 = vmatpush1.bf16.xpose.msra.mxu0 0
        %2009 = vmatprep.subr.bf16.mxu0 0
        %2010 = vmatpush1.bf16.xpose.msra.mxu0 0
        %2011 = vmatprep.subr.bf16.mxu0 0
        %2012 = vmatpush1.bf16.xpose.msra.mxu0 %v1995
        %2013 = vmatprep.subr.bf16.mxu0 0
        %2014 = vmatpush2.bf16.xpose.msra.mxu0 0
        %2015 = vmatprep.subr.bf16.mxu0 0
        %2016 = vmatpush2.bf16.xpose.msra.mxu0 0
        %2017 = vmatprep.subr.bf16.mxu0 0
        %2018 = vmatpush2.bf16.xpose.msra.mxu0 0
        %2019 = vmatprep.subr.bf16.mxu0 0
        %2020 = vmatpush2.bf16.xpose.msra.mxu0 0
        %2021 = vmatprep.subr.bf16.mxu0 0
        %2022 = vmatpush2.bf16.xpose.msra.mxu0 0
        %2023 = vmatprep.subr.bf16.mxu0 0
        %2024 = vmatpush2.bf16.xpose.msra.mxu0 0
        %2025 = vmatprep.subr.bf16.mxu0 0
        %2026 = vmatpush2.bf16.xpose.msra.mxu0 0
        %2027 = vmatprep.subr.bf16.mxu0 0
        %2028 = vmatpush2.bf16.xpose.msra.mxu0 0
        %2029 = vmatprep.mubr.bf16.mxu0 0
        %2030 = vmatmul.mubr.bf16.gmra.mxu0 %v1992
        %v2031 = vpop.f32.mrf.mxu0
        %v2032 = vadd.f32 0.0, %v2031
        %v2033 = vpop.f32.mrf.mxu0
        %v2034 = vpop.f32.mrf.mxu0
        %v2035 = vpop.f32.mrf.mxu0
        %2036 = vdwg.mxu0
        %v2038 = vsel %vm1275, %v1941, 0
        %v2041 = vsel %vm1275, %v1517, 0
        %2043 = vmatprep.subr.bf16.mxu0 0
        %2044 = vmatpush1.bf16.xpose.msra.mxu0 0
        %2045 = vmatprep.subr.bf16.mxu0 0
        %2046 = vmatpush1.bf16.xpose.msra.mxu0 0
        %2047 = vmatprep.subr.bf16.mxu0 0
        %2048 = vmatpush1.bf16.xpose.msra.mxu0 0
        %2049 = vmatprep.subr.bf16.mxu0 0
        %2050 = vmatpush1.bf16.xpose.msra.mxu0 0
        %2051 = vmatprep.subr.bf16.mxu0 0
        %2052 = vmatpush1.bf16.xpose.msra.mxu0 0
        %2053 = vmatprep.subr.bf16.mxu0 0
        %2054 = vmatpush1.bf16.xpose.msra.mxu0 0
        %2055 = vmatprep.subr.bf16.mxu0 0
        %2056 = vmatpush1.bf16.xpose.msra.mxu0 0
        %2057 = vmatprep.subr.bf16.mxu0 0
        %2058 = vmatpush1.bf16.xpose.msra.mxu0 %v2041
        %2059 = vmatprep.subr.bf16.mxu0 0
        %2060 = vmatpush2.bf16.xpose.msra.mxu0 0
        %2061 = vmatprep.subr.bf16.mxu0 0
        %2062 = vmatpush2.bf16.xpose.msra.mxu0 0
        %2063 = vmatprep.subr.bf16.mxu0 0
        %2064 = vmatpush2.bf16.xpose.msra.mxu0 0
        %2065 = vmatprep.subr.bf16.mxu0 0
        %2066 = vmatpush2.bf16.xpose.msra.mxu0 0
        %2067 = vmatprep.subr.bf16.mxu0 0
        %2068 = vmatpush2.bf16.xpose.msra.mxu0 0
        %2069 = vmatprep.subr.bf16.mxu0 0
        %2070 = vmatpush2.bf16.xpose.msra.mxu0 0
        %2071 = vmatprep.subr.bf16.mxu0 0
        %2072 = vmatpush2.bf16.xpose.msra.mxu0 0
        %2073 = vmatprep.subr.bf16.mxu0 0
        %2074 = vmatpush2.bf16.xpose.msra.mxu0 0
        %2075 = vmatprep.mubr.bf16.mxu0 0
        %2076 = vmatmul.mubr.bf16.gmra.mxu0 %v2038
        %v2077 = vpop.f32.mrf.mxu0
        %v2078 = vadd.f32 0.0, %v2077
        %v2079 = vpop.f32.mrf.mxu0
        %v2080 = vpop.f32.mrf.mxu0
        %v2081 = vpop.f32.mrf.mxu0
        %2082 = vdwg.mxu0
        %v2084 = vsel %vm1275, %v1944, 0
        %v2087 = vsel %vm1275, %v1518, 0
        %2089 = vmatprep.subr.bf16.mxu0 0
        %2090 = vmatpush1.bf16.xpose.msra.mxu0 0
        %2091 = vmatprep.subr.bf16.mxu0 0
        %2092 = vmatpush1.bf16.xpose.msra.mxu0 0
        %2093 = vmatprep.subr.bf16.mxu0 0
        %2094 = vmatpush1.bf16.xpose.msra.mxu0 0
        %2095 = vmatprep.subr.bf16.mxu0 0
        %2096 = vmatpush1.bf16.xpose.msra.mxu0 0
        %2097 = vmatprep.subr.bf16.mxu0 0
        %2098 = vmatpush1.bf16.xpose.msra.mxu0 0
        %2099 = vmatprep.subr.bf16.mxu0 0
        %2100 = vmatpush1.bf16.xpose.msra.mxu0 0
        %2101 = vmatprep.subr.bf16.mxu0 0
        %2102 = vmatpush1.bf16.xpose.msra.mxu0 0
        %2103 = vmatprep.subr.bf16.mxu0 0
        %2104 = vmatpush1.bf16.xpose.msra.mxu0 %v2087
        %2105 = vmatprep.subr.bf16.mxu0 0
        %2106 = vmatpush2.bf16.xpose.msra.mxu0 0
        %2107 = vmatprep.subr.bf16.mxu0 0
        %2108 = vmatpush2.bf16.xpose.msra.mxu0 0
        %2109 = vmatprep.subr.bf16.mxu0 0
        %2110 = vmatpush2.bf16.xpose.msra.mxu0 0
        %2111 = vmatprep.subr.bf16.mxu0 0
        %2112 = vmatpush2.bf16.xpose.msra.mxu0 0
        %2113 = vmatprep.subr.bf16.mxu0 0
        %2114 = vmatpush2.bf16.xpose.msra.mxu0 0
        %2115 = vmatprep.subr.bf16.mxu0 0
        %2116 = vmatpush2.bf16.xpose.msra.mxu0 0
        %2117 = vmatprep.subr.bf16.mxu0 0
        %2118 = vmatpush2.bf16.xpose.msra.mxu0 0
        %2119 = vmatprep.subr.bf16.mxu0 0
        %2120 = vmatpush2.bf16.xpose.msra.mxu0 0
        %2121 = vmatprep.mubr.bf16.mxu0 0
        %2122 = vmatmul.mubr.bf16.gmra.mxu0 %v2084
        %v2123 = vpop.f32.mrf.mxu0
        %v2124 = vadd.f32 0.0, %v2123
        %v2125 = vpop.f32.mrf.mxu0
        %v2126 = vpop.f32.mrf.mxu0
        %v2127 = vpop.f32.mrf.mxu0
        %2128 = vdwg.mxu0
        %2129 = vxpose.xlu0.b32.start [1/16] %v1986, 128
        %2130 = vxpose.xlu0.b32.cont [2/16] 0.0, 128
        %2131 = vxpose.xlu0.b32.cont [3/16] 0.0, 128
        %2132 = vxpose.xlu0.b32.cont [4/16] 0.0, 128
        %2133 = vxpose.xlu0.b32.cont [5/16] 0.0, 128
        %2134 = vxpose.xlu0.b32.cont [6/16] 0.0, 128
        %2135 = vxpose.xlu0.b32.cont [7/16] 0.0, 128
        %2136 = vxpose.xlu0.b32.cont [8/16] 0.0, 128
        %2137 = vxpose.xlu0.b32.cont [9/16] 0.0, 128
        %2138 = vxpose.xlu0.b32.cont [10/16] 0.0, 128
        %2139 = vxpose.xlu0.b32.cont [11/16] 0.0, 128
        %2140 = vxpose.xlu0.b32.cont [12/16] 0.0, 128
        %2141 = vxpose.xlu0.b32.cont [13/16] 0.0, 128
        %2142 = vxpose.xlu0.b32.cont [14/16] 0.0, 128
        %2143 = vxpose.xlu0.b32.cont [15/16] 0.0, 128
        %2144 = vxpose.xlu0.b32.end [16/16] 0.0, 128
        %v2145 = vpop.trf.xlu0
        %v2146 = vpop.trf.xlu0
        %v2147 = vpop.trf.xlu0
        %v2148 = vpop.trf.xlu0
        %v2149 = vpop.trf.xlu0
        %v2150 = vpop.trf.xlu0
        %v2151 = vpop.trf.xlu0
        %v2152 = vpop.trf.xlu0
        %v2153 = vpop.trf.xlu0
        %v2154 = vpop.trf.xlu0
        %v2155 = vpop.trf.xlu0
        %v2156 = vpop.trf.xlu0
        %v2157 = vpop.trf.xlu0
        %v2158 = vpop.trf.xlu0
        %v2159 = vpop.trf.xlu0
        %v2160 = vpop.trf.xlu0
        %2161 = vxpose.xlu0.b32.start [1/16] %v2032, 128
        %2162 = vxpose.xlu0.b32.cont [2/16] 0.0, 128
        %2163 = vxpose.xlu0.b32.cont [3/16] 0.0, 128
        %2164 = vxpose.xlu0.b32.cont [4/16] 0.0, 128
        %2165 = vxpose.xlu0.b32.cont [5/16] 0.0, 128
        %2166 = vxpose.xlu0.b32.cont [6/16] 0.0, 128
        %2167 = vxpose.xlu0.b32.cont [7/16] 0.0, 128
        %2168 = vxpose.xlu0.b32.cont [8/16] 0.0, 128
        %2169 = vxpose.xlu0.b32.cont [9/16] 0.0, 128
        %2170 = vxpose.xlu0.b32.cont [10/16] 0.0, 128
        %2171 = vxpose.xlu0.b32.cont [11/16] 0.0, 128
        %2172 = vxpose.xlu0.b32.cont [12/16] 0.0, 128
        %2173 = vxpose.xlu0.b32.cont [13/16] 0.0, 128
        %2174 = vxpose.xlu0.b32.cont [14/16] 0.0, 128
        %2175 = vxpose.xlu0.b32.cont [15/16] 0.0, 128
        %2176 = vxpose.xlu0.b32.end [16/16] 0.0, 128
        %v2177 = vpop.trf.xlu0
        %v2178 = vpop.trf.xlu0
        %v2179 = vpop.trf.xlu0
        %v2180 = vpop.trf.xlu0
        %v2181 = vpop.trf.xlu0
        %v2182 = vpop.trf.xlu0
        %v2183 = vpop.trf.xlu0
        %v2184 = vpop.trf.xlu0
        %v2185 = vpop.trf.xlu0
        %v2186 = vpop.trf.xlu0
        %v2187 = vpop.trf.xlu0
        %v2188 = vpop.trf.xlu0
        %v2189 = vpop.trf.xlu0
        %v2190 = vpop.trf.xlu0
        %v2191 = vpop.trf.xlu0
        %v2192 = vpop.trf.xlu0
        %2193 = vxpose.xlu0.b32.start [1/16] %v2078, 128
        %2194 = vxpose.xlu0.b32.cont [2/16] 0.0, 128
        %2195 = vxpose.xlu0.b32.cont [3/16] 0.0, 128
        %2196 = vxpose.xlu0.b32.cont [4/16] 0.0, 128
        %2197 = vxpose.xlu0.b32.cont [5/16] 0.0, 128
        %2198 = vxpose.xlu0.b32.cont [6/16] 0.0, 128
        %2199 = vxpose.xlu0.b32.cont [7/16] 0.0, 128
        %2200 = vxpose.xlu0.b32.cont [8/16] 0.0, 128
        %2201 = vxpose.xlu0.b32.cont [9/16] 0.0, 128
        %2202 = vxpose.xlu0.b32.cont [10/16] 0.0, 128
        %2203 = vxpose.xlu0.b32.cont [11/16] 0.0, 128
        %2204 = vxpose.xlu0.b32.cont [12/16] 0.0, 128
        %2205 = vxpose.xlu0.b32.cont [13/16] 0.0, 128
        %2206 = vxpose.xlu0.b32.cont [14/16] 0.0, 128
        %2207 = vxpose.xlu0.b32.cont [15/16] 0.0, 128
        %2208 = vxpose.xlu0.b32.end [16/16] 0.0, 128
        %v2209 = vpop.trf.xlu0
        %v2210 = vpop.trf.xlu0
        %v2211 = vpop.trf.xlu0
        %v2212 = vpop.trf.xlu0
        %v2213 = vpop.trf.xlu0
        %v2214 = vpop.trf.xlu0
        %v2215 = vpop.trf.xlu0
        %v2216 = vpop.trf.xlu0
        %v2217 = vpop.trf.xlu0
        %v2218 = vpop.trf.xlu0
        %v2219 = vpop.trf.xlu0
        %v2220 = vpop.trf.xlu0
        %v2221 = vpop.trf.xlu0
        %v2222 = vpop.trf.xlu0
        %v2223 = vpop.trf.xlu0
        %v2224 = vpop.trf.xlu0
        %2225 = vxpose.xlu0.b32.start [1/16] %v2124, 128
        %2226 = vxpose.xlu0.b32.cont [2/16] 0.0, 128
        %2227 = vxpose.xlu0.b32.cont [3/16] 0.0, 128
        %2228 = vxpose.xlu0.b32.cont [4/16] 0.0, 128
        %2229 = vxpose.xlu0.b32.cont [5/16] 0.0, 128
        %2230 = vxpose.xlu0.b32.cont [6/16] 0.0, 128
        %2231 = vxpose.xlu0.b32.cont [7/16] 0.0, 128
        %2232 = vxpose.xlu0.b32.cont [8/16] 0.0, 128
        %2233 = vxpose.xlu0.b32.cont [9/16] 0.0, 128
        %2234 = vxpose.xlu0.b32.cont [10/16] 0.0, 128
        %2235 = vxpose.xlu0.b32.cont [11/16] 0.0, 128
        %2236 = vxpose.xlu0.b32.cont [12/16] 0.0, 128
        %2237 = vxpose.xlu0.b32.cont [13/16] 0.0, 128
        %2238 = vxpose.xlu0.b32.cont [14/16] 0.0, 128
        %2239 = vxpose.xlu0.b32.cont [15/16] 0.0, 128
        %2240 = vxpose.xlu0.b32.end [16/16] 0.0, 128
        %v2241 = vpop.trf.xlu0
        %v2242 = vpop.trf.xlu0
        %v2243 = vpop.trf.xlu0
        %v2244 = vpop.trf.xlu0
        %v2245 = vpop.trf.xlu0
        %v2246 = vpop.trf.xlu0
        %v2247 = vpop.trf.xlu0
        %v2248 = vpop.trf.xlu0
        %v2249 = vpop.trf.xlu0
        %v2250 = vpop.trf.xlu0
        %v2251 = vpop.trf.xlu0
        %v2252 = vpop.trf.xlu0
        %v2253 = vpop.trf.xlu0
        %v2254 = vpop.trf.xlu0
        %v2255 = vpop.trf.xlu0
        %v2256 = vpop.trf.xlu0
        %v2257 = vcombine.low %v2145, %v2209
        %v2258 = vcombine.high %v2145, %v2209
        %v2260 = vunpack.c.l.s4 1983009808
        %v2261 = vunpack.c.0.s8 %v2260
        %v2262 = vlaneseq
        %v2263 = vshrl.u32 %v2262, 7
        %v2264 = vsub.s32 %v2261, %v2263
        %v2265 = vrot.slane %v2257, %v2264
        %v2267 = vunpack.c.l.s4 1983009808
        %v2268 = vunpack.c.0.s8 %v2267
        %v2269 = vlaneseq
        %v2270 = vshrl.u32 %v2269, 7
        %v2271 = vsub.s32 %v2268, %v2270
        %v2272 = vrot.slane %v2258, %v2271
        %v2273 = vcombine.low %v2177, %v2241
        %v2274 = vcombine.high %v2177, %v2241
        %v2276 = vunpack.c.l.s4 1983009808
        %v2277 = vunpack.c.0.s8 %v2276
        %v2278 = vlaneseq
        %v2279 = vshrl.u32 %v2278, 7
        %v2280 = vsub.s32 %v2277, %v2279
        %v2281 = vrot.slane %v2273, %v2280
        %v2283 = vunpack.c.l.s4 1983009808
        %v2284 = vunpack.c.0.s8 %v2283
        %v2285 = vlaneseq
        %v2286 = vshrl.u32 %v2285, 7
        %v2287 = vsub.s32 %v2284, %v2286
        %v2288 = vrot.slane %v2274, %v2287
        %v2289 = vcombine.low %v2265, %v2281
        %v2290 = vcombine.high %v2265, %v2281
        %v2292 = vunpack.c.l.s4 1934713408
        %v2293 = vunpack.c.0.s8 %v2292
        %v2294 = vlaneseq
        %v2295 = vshrl.u32 %v2294, 7
        %v2296 = vsub.s32 %v2293, %v2295
        %v2297 = vrot.slane %v2289, %v2296
        %v2299 = vunpack.c.l.s4 1934713408
        %v2300 = vunpack.c.0.s8 %v2299
        %v2301 = vlaneseq
        %v2302 = vshrl.u32 %v2301, 7
        %v2303 = vsub.s32 %v2300, %v2302
        %v2304 = vrot.slane %v2290, %v2303
        %v2305 = vcombine.low %v2272, %v2288
        %v2306 = vcombine.high %v2272, %v2288
        %v2308 = vunpack.c.l.s4 1934713408
        %v2309 = vunpack.c.0.s8 %v2308
        %v2310 = vlaneseq
        %v2311 = vshrl.u32 %v2310, 7
        %v2312 = vsub.s32 %v2309, %v2311
        %v2313 = vrot.slane %v2305, %v2312
        %v2315 = vunpack.c.l.s4 1934713408
        %v2316 = vunpack.c.0.s8 %v2315
        %v2317 = vlaneseq
        %v2318 = vshrl.u32 %v2317, 7
        %v2319 = vsub.s32 %v2316, %v2318
        %v2320 = vrot.slane %v2306, %v2319
        %v2321 = vcombine.high %v2297, 0.0
        %v2322 = vcombine.high %v2304, 0.0
        %v2323 = vcombine.high %v2313, 0.0
        %v2324 = vcombine.high %v2320, 0.0
        %v2325 = vcombine.low %v2297, %v2304
        %v2327 = vunpack.c.l.s4 1983009808
        %v2328 = vunpack.c.0.s8 %v2327
        %v2329 = vlaneseq
        %v2330 = vshrl.u32 %v2329, 7
        %v2331 = vsub.s32 %v2328, %v2330
        %v2332 = vrot.slane %v2325, %v2331
        %v2333 = vcombine.low %v2321, %v2322
        %v2335 = vunpack.c.l.s4 1983009808
        %v2336 = vunpack.c.0.s8 %v2335
        %v2337 = vlaneseq
        %v2338 = vshrl.u32 %v2337, 7
        %v2339 = vsub.s32 %v2336, %v2338
        %v2340 = vrot.slane %v2333, %v2339
        %v2341 = vcombine.low %v2313, %v2320
        %v2343 = vunpack.c.l.s4 1983009808
        %v2344 = vunpack.c.0.s8 %v2343
        %v2345 = vlaneseq
        %v2346 = vshrl.u32 %v2345, 7
        %v2347 = vsub.s32 %v2344, %v2346
        %v2348 = vrot.slane %v2341, %v2347
        %v2349 = vcombine.low %v2323, %v2324
        %v2351 = vunpack.c.l.s4 1983009808
        %v2352 = vunpack.c.0.s8 %v2351
        %v2353 = vlaneseq
        %v2354 = vshrl.u32 %v2353, 7
        %v2355 = vsub.s32 %v2352, %v2354
        %v2356 = vrot.slane %v2349, %v2355
        %v2357 = vcombine.low %v2332, %v2340
        %v2358 = vcombine.high %v2332, %v2340
        %v2360 = vunpack.c.l.s4 1934713408
        %v2361 = vunpack.c.0.s8 %v2360
        %v2362 = vlaneseq
        %v2363 = vshrl.u32 %v2362, 7
        %v2364 = vsub.s32 %v2361, %v2363
        %v2365 = vrot.slane %v2357, %v2364
        %v2367 = vunpack.c.l.s4 1934713408
        %v2368 = vunpack.c.0.s8 %v2367
        %v2369 = vlaneseq
        %v2370 = vshrl.u32 %v2369, 7
        %v2371 = vsub.s32 %v2368, %v2370
        %v2372 = vrot.slane %v2358, %v2371
        %v2373 = vcombine.low %v2348, %v2356
        %v2374 = vcombine.high %v2348, %v2356
        %v2376 = vunpack.c.l.s4 1934713408
        %v2377 = vunpack.c.0.s8 %v2376
        %v2378 = vlaneseq
        %v2379 = vshrl.u32 %v2378, 7
        %v2380 = vsub.s32 %v2377, %v2379
        %v2381 = vrot.slane %v2373, %v2380
        %v2383 = vunpack.c.l.s4 1934713408
        %v2384 = vunpack.c.0.s8 %v2383
        %v2385 = vlaneseq
        %v2386 = vshrl.u32 %v2385, 7
        %v2387 = vsub.s32 %v2384, %v2386
        %v2388 = vrot.slane %v2374, %v2387
        %v2389 = vcombine.low %v2365, %v2381
        %v2390 = vcombine.high %v2365, %v2381
        %v2391 = vcombine.low %v2372, %v2388
        %v2392 = vcombine.high %v2372, %v2388
        %2394 = vrot.lane.b32.xlu0 %v2390, 8
        %v2395 = vpop.permute.xlu0 %2394
        %2398 = vrot.lane.b32.xlu0 %v2391, 16
        %v2399 = vpop.permute.xlu0 %2398
        %2402 = vrot.lane.b32.xlu0 %v2392, 24
        %v2403 = vpop.permute.xlu0 %2402
        %v2405 = vsel %vm1275, %v2389, %v2395
        %vm2406 = vcmask 130048
        %v2407 = vsel %vm2406, %v2405, %v2399
        %vm2408 = vcmask 195584
        %v2409 = vsel %vm2408, %v2407, %v2403
        %v2410 = vpack.c.bf16 %v2409, %v2409
        %v2411 = vld [vmem:[%s5] sm:$0xf]
        %v2412 = vld [vmem:[%s5 + $0x4] sm:$0xf]
        %v2413 = vld [vmem:[%s5 + $0x8] sm:$0xf]
        %v2414 = vld [vmem:[%s5 + $0xc] sm:$0xf]
        %v2415 = vld [vmem:[%s6] sm:$0x1]
        %v2417 = vlaneseq
        %v2418 = vshrl.u32 %v2417, 7
        %v2419 = vsub.s32 0, %v2418
        %v2420 = vrot.slane %v2415, %v2419
        %v2426 = vunpack.c.l.b16 %v2411
        %v2427 = vunpack.c.l.b16 %v2412
        %v2428 = vunpack.c.l.b16 %v2413
        %v2429 = vunpack.c.l.b16 %v2414
        %v2430 = vpack.c.b16 %v2427, %v2426
        %v2431 = vpack.c.b16 %v2429, %v2428
        %v2435 = vsel %vm440, %v2410, 0
        %2437 = vmatprep.subr.bf16.mxu0 0
        %2438 = vmatpush1.bf16.msra.mxu0 0
        %2439 = vmatprep.subr.bf16.mxu0 0
        %2440 = vmatpush1.bf16.msra.mxu0 0
        %2441 = vmatprep.subr.bf16.mxu0 0
        %2442 = vmatpush1.bf16.msra.mxu0 0
        %2443 = vmatprep.subr.bf16.mxu0 0
        %2444 = vmatpush1.bf16.msra.mxu0 0
        %2445 = vmatprep.subr.bf16.mxu0 0
        %2446 = vmatpush1.bf16.msra.mxu0 0
        %2447 = vmatprep.subr.bf16.mxu0 0
        %2448 = vmatpush1.bf16.msra.mxu0 0
        %2449 = vmatprep.subr.bf16.mxu0 0
        %2450 = vmatpush1.bf16.msra.mxu0 %v2431
        %2451 = vmatprep.subr.bf16.mxu0 0
        %2452 = vmatpush1.bf16.msra.mxu0 %v2430
        %2453 = vmatprep.subr.bf16.mxu0 0
        %2454 = vmatpush2.bf16.msra.mxu0 0
        %2455 = vmatprep.subr.bf16.mxu0 0
        %2456 = vmatpush2.bf16.msra.mxu0 0
        %2457 = vmatprep.subr.bf16.mxu0 0
        %2458 = vmatpush2.bf16.msra.mxu0 0
        %2459 = vmatprep.subr.bf16.mxu0 0
        %2460 = vmatpush2.bf16.msra.mxu0 0
        %2461 = vmatprep.subr.bf16.mxu0 0
        %2462 = vmatpush2.bf16.msra.mxu0 0
        %2463 = vmatprep.subr.bf16.mxu0 0
        %2464 = vmatpush2.bf16.msra.mxu0 0
        %2465 = vmatprep.subr.bf16.mxu0 0
        %2466 = vmatpush2.bf16.msra.mxu0 0
        %2467 = vmatprep.subr.bf16.mxu0 0
        %2468 = vmatpush2.bf16.msra.mxu0 0
        %2469 = vmatprep.mubr.bf16.mxu0 0
        %2470 = vmatmul.mubr.bf16.gmra.mxu0 %v2435
        %v2471 = vpop.f32.mrf.mxu0
        %v2472 = vadd.f32 %v2420, %v2471
        %v2473 = vpop.f32.mrf.mxu0
        %v2474 = vpop.f32.mrf.mxu0
        %v2475 = vpop.f32.mrf.mxu0
        %2476 = vdwg.mxu0
        %v2477 = vadd.f32 %v437, %v2472
        %v2478 = vld [vmem:[%s7] sm:$0x1]
        %v2479 = vld [vmem:[%s8] sm:$0x1]
        %v2480 = vsel %vm440, %v2477, 0.0
        %2481 = vadd.xlane.f32.xlu0 %v2480
        %v2482 = vpop.xlane.xlu0 %2481
        %v2483 = vmul.f32 %v2482, %v444
        %v2484 = vsub.f32 %v2477, %v2483
        %v2485 = vmul.f32 %v2484, %v2484
        %v2486 = vsel %vm440, %v2485, 0.0
        %2487 = vadd.xlane.f32.xlu0 %v2486
        %v2488 = vpop.xlane.xlu0 %2487
        %v2489 = vmul.f32 %v2488, %v444
        %v2490 = vadd.f32 %v2489, 1e-05
        %v2491 = vrsqrt.pop %v2490
        %v2492 = vmul.f32 %v2484, %v2491
        %v2494 = vlaneseq
        %v2495 = vshrl.u32 %v2494, 7
        %v2496 = vsub.s32 0, %v2495
        %v2497 = vrot.slane %v2478, %v2496
        %v2499 = vmul.f32 %v2492, %v2497
        %v2501 = vlaneseq
        %v2502 = vshrl.u32 %v2501, 7
        %v2503 = vsub.s32 0, %v2502
        %v2504 = vrot.slane %v2479, %v2503
        %v2506 = vadd.f32 %v2499, %v2504
        %v2507 = vpack.c.bf16 %v2506, %v2506
        %v2508 = vld [vmem:[%s9] sm:$0xf]
        %v2509 = vld [vmem:[%s9 + $0x4] sm:$0xf]
        %v2510 = vld [vmem:[%s9 + $0x8] sm:$0xf]
        %v2511 = vld [vmem:[%s9 + $0xc] sm:$0xf]
        %v2512 = vld [vmem:[%s10] sm:$0x1]
        %v2514 = vlaneseq
        %v2515 = vshrl.u32 %v2514, 7
        %v2516 = vsub.s32 0, %v2515
        %v2517 = vrot.slane %v2512, %v2516
        %v2523 = vunpack.c.l.b16 %v2508
        %v2524 = vunpack.c.l.b16 %v2509
        %v2525 = vunpack.c.l.b16 %v2510
        %v2526 = vunpack.c.l.b16 %v2511
        %v2527 = vpack.c.b16 %v2524, %v2523
        %v2528 = vpack.c.b16 %v2526, %v2525
        %v2532 = vsel %vm440, %v2507, 0
        %2534 = vmatprep.subr.bf16.mxu0 0
        %2535 = vmatpush1.bf16.msra.mxu0 0
        %2536 = vmatprep.subr.bf16.mxu0 0
        %2537 = vmatpush1.bf16.msra.mxu0 0
        %2538 = vmatprep.subr.bf16.mxu0 0
        %2539 = vmatpush1.bf16.msra.mxu0 0
        %2540 = vmatprep.subr.bf16.mxu0 0
        %2541 = vmatpush1.bf16.msra.mxu0 0
        %2542 = vmatprep.subr.bf16.mxu0 0
        %2543 = vmatpush1.bf16.msra.mxu0 0
        %2544 = vmatprep.subr.bf16.mxu0 0
        %2545 = vmatpush1.bf16.msra.mxu0 0
        %2546 = vmatprep.subr.bf16.mxu0 0
        %2547 = vmatpush1.bf16.msra.mxu0 %v2528
        %2548 = vmatprep.subr.bf16.mxu0 0
        %2549 = vmatpush1.bf16.msra.mxu0 %v2527
        %2550 = vmatprep.subr.bf16.mxu0 0
        %2551 = vmatpush2.bf16.msra.mxu0 0
        %2552 = vmatprep.subr.bf16.mxu0 0
        %2553 = vmatpush2.bf16.msra.mxu0 0
        %2554 = vmatprep.subr.bf16.mxu0 0
        %2555 = vmatpush2.bf16.msra.mxu0 0
        %2556 = vmatprep.subr.bf16.mxu0 0
        %2557 = vmatpush2.bf16.msra.mxu0 0
        %2558 = vmatprep.subr.bf16.mxu0 0
        %2559 = vmatpush2.bf16.msra.mxu0 0
        %2560 = vmatprep.subr.bf16.mxu0 0
        %2561 = vmatpush2.bf16.msra.mxu0 0
        %2562 = vmatprep.subr.bf16.mxu0 0
        %2563 = vmatpush2.bf16.msra.mxu0 0
        %2564 = vmatprep.subr.bf16.mxu0 0
        %2565 = vmatpush2.bf16.msra.mxu0 0
        %2566 = vmatprep.mubr.bf16.mxu0 0
        %2567 = vmatmul.mubr.bf16.gmra.mxu0 %v2532
        %v2568 = vpop.f32.mrf.mxu0
        %v2569 = vadd.f32 %v2517, %v2568
        %v2570 = vpop.f32.mrf.mxu0
        %v2571 = vpop.f32.mrf.mxu0
        %v2572 = vpop.f32.mrf.mxu0
        %2573 = vdwg.mxu0
        %v2574 = vmul.f32 %v2569, 0.5
        %v2575 = vmul.f32 %v2569, 0.70710677
        %v2576 = verf.f32.pop %v2575
        %v2577 = vadd.f32 %v2576, 1.0
        %v2578 = vmul.f32 %v2574, %v2577
        %v2579 = vpack.c.bf16 %v2578, %v2578
        %v2580 = vld [vmem:[%s11] sm:$0xf]
        %v2581 = vld [vmem:[%s11 + $0x4] sm:$0xf]
        %v2582 = vld [vmem:[%s11 + $0x8] sm:$0xf]
        %v2583 = vld [vmem:[%s11 + $0xc] sm:$0xf]
        %v2584 = vld [vmem:[%s11 + $0x10] sm:$0xf]
        %v2585 = vld [vmem:[%s11 + $0x14] sm:$0xf]
        %v2586 = vld [vmem:[%s11 + $0x18] sm:$0xf]
        %v2587 = vld [vmem:[%s11 + $0x1c] sm:$0xf]
        %v2588 = vld [vmem:[%s11 + $0x20] sm:$0xf]
        %v2589 = vld [vmem:[%s11 + $0x24] sm:$0xf]
        %v2590 = vld [vmem:[%s11 + $0x28] sm:$0xf]
        %v2591 = vld [vmem:[%s11 + $0x2c] sm:$0xf]
        %v2592 = vld [vmem:[%s11 + $0x30] sm:$0xf]
        %v2593 = vld [vmem:[%s11 + $0x34] sm:$0xf]
        %v2594 = vld [vmem:[%s11 + $0x38] sm:$0xf]
        %v2595 = vld [vmem:[%s11 + $0x3c] sm:$0xf]
        %v2596 = vld [vmem:[%s12] sm:$0x1]
        %v2598 = vlaneseq
        %v2599 = vshrl.u32 %v2598, 7
        %v2600 = vsub.s32 0, %v2599
        %v2601 = vrot.slane %v2596, %v2600
        %v2619 = vunpack.c.l.b16 %v2580
        %v2620 = vunpack.c.l.b16 %v2581
        %v2621 = vunpack.c.l.b16 %v2582
        %v2622 = vunpack.c.l.b16 %v2583
        %v2623 = vunpack.c.l.b16 %v2584
        %v2624 = vunpack.c.l.b16 %v2585
        %v2625 = vunpack.c.l.b16 %v2586
        %v2626 = vunpack.c.l.b16 %v2587
        %v2627 = vunpack.c.l.b16 %v2588
        %v2628 = vunpack.c.l.b16 %v2589
        %v2629 = vunpack.c.l.b16 %v2590
        %v2630 = vunpack.c.l.b16 %v2591
        %v2631 = vunpack.c.l.b16 %v2592
        %v2632 = vunpack.c.l.b16 %v2593
        %v2633 = vunpack.c.l.b16 %v2594
        %v2634 = vunpack.c.l.b16 %v2595
        %v2635 = vpack.c.b16 %v2620, %v2619
        %v2636 = vpack.c.b16 %v2622, %v2621
        %v2637 = vpack.c.b16 %v2624, %v2623
        %v2638 = vpack.c.b16 %v2626, %v2625
        %v2639 = vpack.c.b16 %v2628, %v2627
        %v2640 = vpack.c.b16 %v2630, %v2629
        %v2641 = vpack.c.b16 %v2632, %v2631
        %v2642 = vpack.c.b16 %v2634, %v2633
        %2651 = vmatprep.subr.bf16.mxu0 0
        %2652 = vmatpush1.bf16.msra.mxu0 %v2642
        %2653 = vmatprep.subr.bf16.mxu0 0
        %2654 = vmatpush1.bf16.msra.mxu0 %v2641
        %2655 = vmatprep.subr.bf16.mxu0 0
        %2656 = vmatpush1.bf16.msra.mxu0 %v2640
        %2657 = vmatprep.subr.bf16.mxu0 0
        %2658 = vmatpush1.bf16.msra.mxu0 %v2639
        %2659 = vmatprep.subr.bf16.mxu0 0
        %2660 = vmatpush1.bf16.msra.mxu0 %v2638
        %2661 = vmatprep.subr.bf16.mxu0 0
        %2662 = vmatpush1.bf16.msra.mxu0 %v2637
        %2663 = vmatprep.subr.bf16.mxu0 0
        %2664 = vmatpush1.bf16.msra.mxu0 %v2636
        %2665 = vmatprep.subr.bf16.mxu0 0
        %2666 = vmatpush1.bf16.msra.mxu0 %v2635
        %2667 = vmatprep.subr.bf16.mxu0 0
        %2668 = vmatpush2.bf16.msra.mxu0 0
        %2669 = vmatprep.subr.bf16.mxu0 0
        %2670 = vmatpush2.bf16.msra.mxu0 0
        %2671 = vmatprep.subr.bf16.mxu0 0
        %2672 = vmatpush2.bf16.msra.mxu0 0
        %2673 = vmatprep.subr.bf16.mxu0 0
        %2674 = vmatpush2.bf16.msra.mxu0 0
        %2675 = vmatprep.subr.bf16.mxu0 0
        %2676 = vmatpush2.bf16.msra.mxu0 0
        %2677 = vmatprep.subr.bf16.mxu0 0
        %2678 = vmatpush2.bf16.msra.mxu0 0
        %2679 = vmatprep.subr.bf16.mxu0 0
        %2680 = vmatpush2.bf16.msra.mxu0 0
        %2681 = vmatprep.subr.bf16.mxu0 0
        %2682 = vmatpush2.bf16.msra.mxu0 0
        %2683 = vmatprep.mubr.bf16.mxu0 0
        %2684 = vmatmul.mubr.bf16.gmra.mxu0 %v2579
        %v2685 = vpop.f32.mrf.mxu0
        %v2686 = vadd.f32 %v2601, %v2685
        %v2687 = vpop.f32.mrf.mxu0
        %v2688 = vpop.f32.mrf.mxu0
        %v2689 = vpop.f32.mrf.mxu0
        %2690 = vdwg.mxu0
        %v2691 = vadd.f32 %v2477, %v2686
        %2692 = vst.msk [vmem:[%s431] sm:$0xff] %vm440, %v2691
        %s2693 = sand.u32 %s313, 1
        %s2694 = scalar_lea.sflag [#allocation3], %s2693
        %s2695 = sand.u32 %s313, 1
        %s2696 = smul.addr %s2695, 8
        %s2697 = scalar_lea.vmem [#allocation2], %s2696
        // Predicated region
        $region73: #{tpu_custom_call.1} parent=71 // pred_check
          %p2698 = pneg %p323
        $region74: #{tpu_custom_call.1} parent=71 // pred_check_branch
          %2700 = sbr.rel (%p2698) target = $region76
        $region75: #{tpu_custom_call.1} parent=71 // pred_region
          %s2702 = ssub.s32 128, 128
          %2703 = vsyncadd %s2694, %s2702
          %s2704 = smul.addr %s27, 128
          %s2705 = scalar_lea.hbm %s13, %s2704
          %s2707 = sshll.u32 %s2697, 4
          %s2708 = int_to_ptr.vmem [resolvable:$true] %s2707
          %2710 = dma.vmem_to_hbm [thread:$0]  %s2708, 128, %s2705, %s2694
        $region76: #{tpu_custom_call.1} parent=71 // pred_fallthru
          _
      $region72: #{tpu_custom_call.1} parent=5 // pred_fallthru
        _
      %p2711 = scmp.le.s32.totalorder 2, %s22
      // Predicated region
      $region77: #{tpu_custom_call.1} parent=5 // pred_check
        %p2712 = pneg %p2711
      $region78: #{tpu_custom_call.1} parent=5 // pred_check_branch
        %2714 = sbr.rel (%p2712) target = $region80
      $region79: #{tpu_custom_call.1} parent=5 // pred_region
        %s2715 = ssub.s32 %s22, 2
        // Predicated region
        $region81: #{tpu_custom_call.1} parent=79 // pred_check
          %p2716 = pneg %p329
        $region82: #{tpu_custom_call.1} parent=79 // pred_check_branch
          %2718 = sbr.rel (%p2716) target = $region84
        $region83: #{tpu_custom_call.1} parent=79 // pred_region
          %s2719 = sand.u32 %s314, 1
          %s2720 = scalar_lea.sflag [#allocation3], %s2719
          %s2721 = sand.u32 %s314, 1
          %s2722 = smul.addr %s2721, 8
          %s2723 = scalar_lea.vmem [#allocation2], %s2722
          %2724 = dma.done %s2720, 128
        $region84: #{tpu_custom_call.1} parent=79 // pred_fallthru
          _
      $region80: #{tpu_custom_call.1} parent=5 // pred_fallthru
        _
    $region6: #{tpu_custom_call.1} parent=1 // loop_footer
      %s26 = sadd.s32 1, %s22
    $region7: #{tpu_custom_call.1} parent=1 // loop_footer_branch
      %21 = sbr.rel target = $region3
    $region8: #{tpu_custom_call.1} parent=1 // loop_exit
      _
    %2725 = vsyncpa [#allocation3], 1
    %s2726 = scalar_lea.sflag [#allocation3], 1
    %2727 = vsyncpa %s2726, 1

</llo_original>
